<compile_context>
chip_gen: v7x
topology: tpu7x:2x2x1
jax: 0.10.0
libtpu: 0.0.40
codegen_flags: <defaults>
</compile_context>

<pallas_src>
import math
import jax
import jax.numpy as jnp
from jax.experimental import pallas as pl
from jax.experimental.pallas import tpu as pltpu

# ----- problem sizes (small, consistent with the module) -----
B, T, S, D = 2, 8, 16, 32        # batch, tgt len, src len, model size
H = 8                            # num_heads (module default)
DH = D // H                      # per-head dim
HID = 64                         # feed-forward hidden size
EPS = 1e-6
OUT_W = 128                      # lane-dense output slab width (>= 2*D + S)
N_SMALL = 10                     # small rows in the width-D slab (4 biases + 6 LN rows)


# =============================== Pallas kernel ===============================
def decoder_layer_kernel(acts_ref, sbias_ref, cbias_ref, hsel_ref,
                         w96_ref, w64_ref, w32_ref, out_ref):
    f32 = jnp.float32
    x = acts_ref[0:B * T, :]                       # (B*T, D)  decoder input (flattened)
    mem = acts_ref[B * T:B * (T + S), :]           # (B*S, D)  encoder memory bank
    hsel = hsel_ref[...]                           # (1, H, 1, D) head-selection mask

    # ---- unpack width-grouped weight slabs (static, 8-aligned row slices) ----
    w_sqkv = w96_ref[0:D, :]                       # (D, 3D) fused self QKV
    b_sqkv = w96_ref[D:D + 1, :]                   # (1, 3D)

    w_ckv = w64_ref[0:D, :]                        # (D, 2D) fused ctx KV
    w1 = w64_ref[D:2 * D, :]                       # (D, HID)
    b_ckv = w64_ref[2 * D:2 * D + 1, :]            # (1, 2D)
    b1 = w64_ref[2 * D + 1:2 * D + 2, :]           # (1, HID)

    w_cq = w32_ref[0:D, :]                         # (D, D)  ctx Q (scale folded)
    w_so = w32_ref[D:2 * D, :]                     # (D, D)  self output proj
    w_co = w32_ref[2 * D:3 * D, :]                 # (D, D)  ctx output proj
    w2 = w32_ref[3 * D:3 * D + HID, :]             # (HID, D)
    small = w32_ref[3 * D + HID:3 * D + HID + N_SMALL, :]   # (10, D)
    b_cq, b_so, b_co, b2 = small[0:1], small[1:2], small[2:3], small[3:4]
    ln1g, ln1b = small[4:5], small[5:6]
    ln2g, ln2b = small[6:7], small[7:8]
    ln3g, ln3b = small[8:9], small[9:10]

    def layer_norm(v, g, b):
        mu = jnp.mean(v, axis=-1, keepdims=True)
        c = v - mu
        var = jnp.mean(c * c, axis=-1, keepdims=True)
        return c * jax.lax.rsqrt(var + EPS) * g + b          # rsqrt -> EUP

    def mha(q2, k2, v2, bias, w_o, b_o, lk):
        # q2: (B*T, D) projected query (scale already folded in)
        # k2/v2: (B*lk, D) projected keys/values; bias: (B, 1, T, lk) additive
        # Per-head scores via head-masked Q: one batched lane-dense matmul
        # (contraction over full D; masked channels contribute exact zeros).
        qm = (q2.reshape(B, 1, T, D) * hsel).reshape(B, H * T, D)   # (B, H*T, D)
        k3 = k2.reshape(B, lk, D)
        v3 = v2.reshape(B, lk, D)
        s = jnp.einsum('bmd,bkd->bmk', qm, k3,
                       preferred_element_type=f32).reshape(B, H, T, lk) + bias
        p = jax.nn.softmax(s, axis=-1)                              # (B, H, T, lk)
        pv = jnp.einsum('bmk,bkd->bmd', p.reshape(B, H * T, lk), v3,
                        preferred_element_type=f32).reshape(B, H, T, D)
        ctx = jnp.sum(pv * hsel, axis=1).reshape(B * T, D)          # head reassembly
        out = jnp.dot(ctx, w_o, preferred_element_type=f32) + b_o   # fused O-proj
        return out, p

    # ---------- LayerNorm1 + self-attention (single fused QKV matmul) ----------
    input_norm = layer_norm(x, ln1g, ln1b)                 # == all_input
    qkv = jnp.dot(input_norm, w_sqkv, preferred_element_type=f32) + b_sqkv   # (B*T, 3D)
    self_out, _ = mha(qkv[:, 0:D], qkv[:, D:2 * D], qkv[:, 2 * D:3 * D],
                      sbias_ref[...], w_so, b_so, T)
    query = self_out + x                                   # dropout = identity

    # ---------- LayerNorm2 + context attention (single fused KV matmul) ----------
    query_norm = layer_norm(query, ln2g, ln2b)
    cq = jnp.dot(query_norm, w_cq, preferred_element_type=f32) + b_cq        # (B*T, D)
    ckv = jnp.dot(mem, w_ckv, preferred_element_type=f32) + b_ckv            # (B*S, 2D)
    mid, p_ctx = mha(cq, ckv[:, 0:D], ckv[:, D:2 * D],
                     cbias_ref[...], w_co, b_co, S)
    ffn_in = mid + query
    attn = p_ctx[:, 0].reshape(B * T, S)                   # top-head context attention

    # ---------- PositionwiseFeedForward: LN -> w1 -> relu -> w2 -> residual ----------
    y = layer_norm(ffn_in, ln3g, ln3b)
    y = jnp.maximum(jnp.dot(y, w1, preferred_element_type=f32) + b1, 0.0)
    y = jnp.dot(y, w2, preferred_element_type=f32) + b2
    output = y + ffn_in                                    # (B*T, D)

    # single lane-dense 128-wide output slab: [output | all_input | attn | zero pad]
    pad = jnp.zeros((B * T, OUT_W - 2 * D - S), f32)
    out_ref[...] = jnp.concatenate([output, input_norm, attn, pad], axis=-1)


# ============================ wrapper / param packing =========================
def prepare_decoder_params(params):
    """One-time packing of parameters into width-grouped VMEM slabs (hoisted out of
    the per-call path)."""
    scale = 1.0 / math.sqrt(DH)
    aw, ab, ln = params["aw"], params["ab"], params["ln"]

    # width-96 slab: fused self QKV weight (scale folded into Q block) + bias row
    w_sqkv = jnp.concatenate([aw[0, 0] * scale, aw[0, 1], aw[0, 2]], axis=1)   # (D, 3D)
    b_sqkv = jnp.concatenate([ab[0, 0] * scale, ab[0, 1], ab[0, 2]])[None, :]  # (1, 3D)
    w96 = jnp.concatenate([w_sqkv, b_sqkv], axis=0)                            # (33, 96)

    # width-64 slab: fused ctx KV + FFN w1, then their bias rows
    w_ckv = jnp.concatenate([aw[1, 1], aw[1, 2]], axis=1)                      # (D, 2D)
    b_ckv = jnp.concatenate([ab[1, 1], ab[1, 2]])[None, :]                     # (1, 2D)
    w64 = jnp.concatenate([w_ckv, params["w1"], b_ckv, params["b1"]], axis=0)  # (66, 64)

    # width-32 slab: ctx-Q, self-O, ctx-O, FFN w2, then small bias / LN rows
    small = jnp.stack([ab[1, 0] * scale,        # b_cq (scale folded)
                       ab[0, 3],                # b_so
                       ab[1, 3],                # b_co
                       params["b2"][0],         # b2
                       ln[0, 0], ln[0, 1],      # LN1 gamma / beta
                       ln[1, 0], ln[1, 1],      # LN2 gamma / beta
                       ln[2, 0], ln[2, 1]],     # FFN LN gamma / beta
                      axis=0)                   # (10, D)
    w32 = jnp.concatenate([aw[1, 0] * scale,    # (D, D)  ctx Q (scale folded)
                           aw[0, 3],            # (D, D)  self O
                           aw[1, 3],            # (D, D)  ctx O
                           params["w2"],        # (HID, D)
                           small], axis=0)      # (170, D)

    # head-selection mask: hsel[0, h, 0, c] = 1 iff channel c belongs to head h
    hsel = (jnp.arange(D)[None, :] // DH == jnp.arange(H)[:, None]).astype(jnp.float32)
    hsel = hsel.reshape(1, H, 1, D)
    return dict(w96=w96, w64=w64, w32=w32, hsel=hsel)


def decoder_layer_pallas(inputs, memory_bank, src_pad_mask, tgt_pad_mask, prepped):
    # additive attention biases (dec_mask = key padding OR subsequent mask)
    tri = jnp.triu(jnp.ones((T, T), jnp.float32), k=1)
    dec_mask = (tgt_pad_mask + tri[None]) > 0
    sbias = jnp.where(dec_mask, -1e18, 0.0).astype(jnp.float32)[:, None]        # (B,1,T,T)
    cbias = jnp.where(src_pad_mask > 0, -1e18, 0.0).astype(jnp.float32)[:, None]  # (B,1,T,S)

    acts = jnp.concatenate([inputs.reshape(B * T, D),
                            memory_bank.reshape(B * S, D)], axis=0)             # (B*(T+S), D)

    vmem = pl.BlockSpec(memory_space=pltpu.MemorySpace.VMEM)   # whole-array, VMEM resident
    slab = pl.pallas_call(
        decoder_layer_kernel,
        out_shape=jax.ShapeDtypeStruct((B * T, OUT_W), jnp.float32),
        in_specs=[vmem] * 7,
        out_specs=vmem,
    )(acts, sbias, cbias, prepped["hsel"],
      prepped["w96"], prepped["w64"], prepped["w32"])

    output = slab[:, :D].reshape(B, T, D)
    all_input = slab[:, D:2 * D].reshape(B, T, D)
    attn = slab[:, 2 * D:2 * D + S].reshape(B, T, S)
    return output, attn, all_input


# ======================= pure-JAX reference (PyTorch-like) ====================
def _layer_norm_ref(x, g, b):
    mu = jnp.mean(x, axis=-1, keepdims=True)
    var = jnp.mean((x - mu) ** 2, axis=-1, keepdims=True)
    return (x - mu) / jnp.sqrt(var + EPS) * g + b


def _mha_ref(key, value, query, w, b, mask):
    def lin(x, i):
        return x @ w[i] + b[i]

    def shape(x):
        return x.reshape(x.shape[0], -1, H, DH).transpose(0, 2, 1, 3)

    q = shape(lin(query, 0)) / math.sqrt(DH)
    k = shape(lin(key, 1))
    v = shape(lin(value, 2))
    scores = jnp.einsum('bhqd,bhkd->bhqk', q, k)
    scores = jnp.where(mask[:, None, :, :], -1e18, scores)
    attn = jax.nn.softmax(scores, axis=-1)
    ctx = jnp.einsum('bhqk,bhkd->bhqd', attn, v)
    ctx = ctx.transpose(0, 2, 1, 3).reshape(query.shape[0], -1, D)
    return ctx @ w[3] + b[3], attn[:, 0]


def decoder_layer_ref(inputs, memory_bank, src_pad_mask, tgt_pad_mask, params):
    tri = jnp.triu(jnp.ones((T, T), jnp.float32), k=1)
    dec_mask = (tgt_pad_mask + tri[None]) > 0
    ln, aw, ab = params["ln"], params["aw"], params["ab"]
    input_norm = _layer_norm_ref(inputs, ln[0, 0], ln[0, 1])
    all_input = input_norm
    query, _ = _mha_ref(all_input, all_input, input_norm, aw[0], ab[0], dec_mask)
    query = query + inputs
    query_norm = _layer_norm_ref(query, ln[1, 0], ln[1, 1])
    mid, attn = _mha_ref(memory_bank, memory_bank, query_norm, aw[1], ab[1],
                         src_pad_mask > 0)
    x = mid + query
    y = _layer_norm_ref(x, ln[2, 0], ln[2, 1])
    y = jnp.maximum(y @ params["w1"] + params["b1"][0], 0.0)
    y = y @ params["w2"] + params["b2"][0]
    return y + x, attn, all_input


# =================================== main =====================================
if __name__ == "__main__":
    key = jax.random.PRNGKey(0)
    ks = jax.random.split(key, 10)

    # deterministic synthetic parameters
    ln = jnp.stack([jnp.stack([jnp.ones((D,), jnp.float32) + 0.05 * jax.random.normal(ks[0], (D,)),
                               0.05 * jax.random.normal(ks[1], (D,))], axis=0)
                    for _ in range(3)], axis=0)                      # (3, 2, D)
    aw = 0.1 * jax.random.normal(ks[2], (2, 4, D, D), jnp.float32)   # (self,ctx) x (q,k,v,o)
    ab = 0.05 * jax.random.normal(ks[3], (2, 4, D), jnp.float32)
    w1 = 0.1 * jax.random.normal(ks[4], (D, HID), jnp.float32)
    b1 = 0.05 * jax.random.normal(ks[5], (1, HID), jnp.float32)
    w2 = 0.1 * jax.random.normal(ks[6], (HID, D), jnp.float32)
    b2 = 0.05 * jax.random.normal(ks[7], (1, D), jnp.float32)
    params = dict(ln=ln, aw=aw, ab=ab, w1=w1, b1=b1, w2=w2, b2=b2)

    # inputs
    inputs = jax.random.normal(ks[8], (B, T, D), jnp.float32)
    memory_bank = jax.random.normal(ks[9], (B, S, D), jnp.float32)
    tgt_lens = jnp.array([T, T - 2])
    src_lens = jnp.array([S, S - 4])
    tgt_pad = (jnp.arange(T)[None, :] >= tgt_lens[:, None]).astype(jnp.float32)  # (B, T)
    tgt_pad_mask = jnp.broadcast_to(tgt_pad[:, None, :], (B, T, T))
    src_pad = (jnp.arange(S)[None, :] >= src_lens[:, None]).astype(jnp.float32)  # (B, S)
    src_pad_mask = jnp.broadcast_to(src_pad[:, None, :], (B, T, S))

    prepped = prepare_decoder_params(params)          # one-time weight packing
    jax.block_until_ready(prepped)

    out, attn, all_input = decoder_layer_pallas(inputs, memory_bank,
                                                src_pad_mask, tgt_pad_mask, prepped)
    jax.block_until_ready((out, attn, all_input))

    ref_out, ref_attn, ref_all = decoder_layer_ref(inputs, memory_bank,
                                                   src_pad_mask, tgt_pad_mask, params)
    assert jnp.allclose(out, ref_out, atol=1e-4, rtol=1e-4), "output mismatch"
    assert jnp.allclose(attn, ref_attn, atol=2e-5, rtol=1e-4), "attn mismatch"
    assert jnp.allclose(all_input, ref_all, atol=2e-5, rtol=1e-4), "all_input mismatch"

    print("KERNEL_OK")
</pallas_src>

<mosaic_0001>
module attributes {stable_mosaic.version = 11 : i64} {
  func.func @decoder_layer_kernel(%arg0: memref<48x32xf32, #tpu.memory_space<vmem>>, %arg1: memref<2x1x8x8xf32, #tpu.memory_space<vmem>>, %arg2: memref<2x1x8x16xf32, #tpu.memory_space<vmem>>, %arg3: memref<1x8x1x32xf32, #tpu.memory_space<vmem>>, %arg4: memref<33x96xf32, #tpu.memory_space<vmem>>, %arg5: memref<66x64xf32, #tpu.memory_space<vmem>>, %arg6: memref<170x32xf32, #tpu.memory_space<vmem>>, %arg7: memref<16x128xf32, #tpu.memory_space<vmem>>) attributes {dimension_semantics = [], scalar_prefetch = 0 : i64, scratch_operands = 0 : i64, tpu.core_type = #tpu.core_type<tc>} {
    %c0 = arith.constant 0 : index
    %c0_0 = arith.constant 0 : index
    %0 = vector.load %arg0[%c0, %c0_0] : memref<48x32xf32, #tpu.memory_space<vmem>>, vector<16x32xf32>
    %c16 = arith.constant 16 : index
    %c0_1 = arith.constant 0 : index
    %1 = vector.load %arg0[%c16, %c0_1] : memref<48x32xf32, #tpu.memory_space<vmem>>, vector<32x32xf32>
    %c0_2 = arith.constant 0 : index
    %c0_3 = arith.constant 0 : index
    %c0_4 = arith.constant 0 : index
    %c0_5 = arith.constant 0 : index
    %2 = vector.load %arg3[%c0_2, %c0_3, %c0_4, %c0_5] : memref<1x8x1x32xf32, #tpu.memory_space<vmem>>, vector<1x8x1x32xf32>
    %c0_6 = arith.constant 0 : index
    %c0_7 = arith.constant 0 : index
    %3 = vector.load %arg4[%c0_6, %c0_7] : memref<33x96xf32, #tpu.memory_space<vmem>>, vector<32x96xf32>
    %c32 = arith.constant 32 : index
    %c0_8 = arith.constant 0 : index
    %4 = vector.load %arg4[%c32, %c0_8] : memref<33x96xf32, #tpu.memory_space<vmem>>, vector<1x96xf32>
    %c0_9 = arith.constant 0 : index
    %c0_10 = arith.constant 0 : index
    %5 = vector.load %arg5[%c0_9, %c0_10] : memref<66x64xf32, #tpu.memory_space<vmem>>, vector<32x64xf32>
    %c32_11 = arith.constant 32 : index
    %c0_12 = arith.constant 0 : index
    %6 = vector.load %arg5[%c32_11, %c0_12] : memref<66x64xf32, #tpu.memory_space<vmem>>, vector<32x64xf32>
    %c64 = arith.constant 64 : index
    %c0_13 = arith.constant 0 : index
    %7 = vector.load %arg5[%c64, %c0_13] : memref<66x64xf32, #tpu.memory_space<vmem>>, vector<1x64xf32>
    %c65 = arith.constant 65 : index
    %c0_14 = arith.constant 0 : index
    %8 = vector.load %arg5[%c65, %c0_14] : memref<66x64xf32, #tpu.memory_space<vmem>>, vector<1x64xf32>
    %c0_15 = arith.constant 0 : index
    %c0_16 = arith.constant 0 : index
    %9 = vector.load %arg6[%c0_15, %c0_16] : memref<170x32xf32, #tpu.memory_space<vmem>>, vector<32x32xf32>
    %c32_17 = arith.constant 32 : index
    %c0_18 = arith.constant 0 : index
    %10 = vector.load %arg6[%c32_17, %c0_18] : memref<170x32xf32, #tpu.memory_space<vmem>>, vector<32x32xf32>
    %c64_19 = arith.constant 64 : index
    %c0_20 = arith.constant 0 : index
    %11 = vector.load %arg6[%c64_19, %c0_20] : memref<170x32xf32, #tpu.memory_space<vmem>>, vector<32x32xf32>
    %c96 = arith.constant 96 : index
    %c0_21 = arith.constant 0 : index
    %12 = vector.load %arg6[%c96, %c0_21] : memref<170x32xf32, #tpu.memory_space<vmem>>, vector<64x32xf32>
    %c160 = arith.constant 160 : index
    %c0_22 = arith.constant 0 : index
    %13 = vector.load %arg6[%c160, %c0_22] : memref<170x32xf32, #tpu.memory_space<vmem>>, vector<10x32xf32>
    %14 = vector.extract_strided_slice %13 {offsets = [0, 0], sizes = [1, 32], strides = [1, 1]} : vector<10x32xf32> to vector<1x32xf32>
    %15 = vector.extract_strided_slice %13 {offsets = [1, 0], sizes = [1, 32], strides = [1, 1]} : vector<10x32xf32> to vector<1x32xf32>
    %16 = vector.extract_strided_slice %13 {offsets = [2, 0], sizes = [1, 32], strides = [1, 1]} : vector<10x32xf32> to vector<1x32xf32>
    %17 = vector.extract_strided_slice %13 {offsets = [3, 0], sizes = [1, 32], strides = [1, 1]} : vector<10x32xf32> to vector<1x32xf32>
    %18 = vector.extract_strided_slice %13 {offsets = [4, 0], sizes = [1, 32], strides = [1, 1]} : vector<10x32xf32> to vector<1x32xf32>
    %19 = vector.extract_strided_slice %13 {offsets = [5, 0], sizes = [1, 32], strides = [1, 1]} : vector<10x32xf32> to vector<1x32xf32>
    %20 = vector.extract_strided_slice %13 {offsets = [6, 0], sizes = [1, 32], strides = [1, 1]} : vector<10x32xf32> to vector<1x32xf32>
    %21 = vector.extract_strided_slice %13 {offsets = [7, 0], sizes = [1, 32], strides = [1, 1]} : vector<10x32xf32> to vector<1x32xf32>
    %22 = vector.extract_strided_slice %13 {offsets = [8, 0], sizes = [1, 32], strides = [1, 1]} : vector<10x32xf32> to vector<1x32xf32>
    %23 = vector.extract_strided_slice %13 {offsets = [9, 0], sizes = [1, 32], strides = [1, 1]} : vector<10x32xf32> to vector<1x32xf32>
    %cst = arith.constant dense<0.000000e+00> : vector<16xf32>
    %24 = vector.multi_reduction <add>, %0, %cst [1] : vector<16x32xf32> to vector<16xf32>
    %25 = vector.shape_cast %24 : vector<16xf32> to vector<16x1xf32>
    %cst_23 = arith.constant 3.200000e+01 : f32
    %26 = vector.broadcast %cst_23 : f32 to vector<16x1xf32>
    %27 = arith.divf %25, %26 : vector<16x1xf32>
    %28 = vector.broadcast %27 : vector<16x1xf32> to vector<16x32xf32>
    %29 = arith.subf %0, %28 : vector<16x32xf32>
    %30 = arith.mulf %29, %29 : vector<16x32xf32>
    %cst_24 = arith.constant dense<0.000000e+00> : vector<16xf32>
    %31 = vector.multi_reduction <add>, %30, %cst_24 [1] : vector<16x32xf32> to vector<16xf32>
    %32 = vector.shape_cast %31 : vector<16xf32> to vector<16x1xf32>
    %cst_25 = arith.constant 3.200000e+01 : f32
    %33 = vector.broadcast %cst_25 : f32 to vector<16x1xf32>
    %34 = arith.divf %32, %33 : vector<16x1xf32>
    %cst_26 = arith.constant 9.99999997E-7 : f32
    %35 = vector.broadcast %cst_26 : f32 to vector<16x1xf32>
    %36 = arith.addf %34, %35 : vector<16x1xf32>
    %37 = math.rsqrt %36 : vector<16x1xf32>
    %38 = vector.broadcast %37 : vector<16x1xf32> to vector<16x32xf32>
    %39 = arith.mulf %29, %38 : vector<16x32xf32>
    %40 = vector.broadcast %18 : vector<1x32xf32> to vector<16x32xf32>
    %41 = arith.mulf %39, %40 : vector<16x32xf32>
    %42 = vector.broadcast %19 : vector<1x32xf32> to vector<16x32xf32>
    %43 = arith.addf %41, %42 : vector<16x32xf32>
    %cst_27 = arith.constant dense<0.000000e+00> : vector<16x96xf32>
    %44 = tpu.matmul %43, %3, %cst_27 {dimension_numbers = #tpu.dot_dimension_numbers<[1], [0], [0], [1], [0, 0, 1, 1], [], []>} : vector<16x32xf32>, vector<32x96xf32>, vector<16x96xf32> -> vector<16x96xf32>
    %45 = vector.broadcast %4 : vector<1x96xf32> to vector<16x96xf32>
    %46 = arith.addf %44, %45 : vector<16x96xf32>
    %47 = vector.extract_strided_slice %46 {offsets = [0, 0], sizes = [16, 32], strides = [1, 1]} : vector<16x96xf32> to vector<16x32xf32>
    %48 = vector.extract_strided_slice %46 {offsets = [0, 32], sizes = [16, 32], strides = [1, 1]} : vector<16x96xf32> to vector<16x32xf32>
    %49 = vector.extract_strided_slice %46 {offsets = [0, 64], sizes = [16, 32], strides = [1, 1]} : vector<16x96xf32> to vector<16x32xf32>
    %c0_28 = arith.constant 0 : index
    %c0_29 = arith.constant 0 : index
    %c0_30 = arith.constant 0 : index
    %c0_31 = arith.constant 0 : index
    %50 = vector.load %arg1[%c0_28, %c0_29, %c0_30, %c0_31] : memref<2x1x8x8xf32, #tpu.memory_space<vmem>>, vector<2x1x8x8xf32>
    %51 = vector.shape_cast %47 : vector<16x32xf32> to vector<2x1x8x32xf32>
    %52 = vector.broadcast %51 : vector<2x1x8x32xf32> to vector<2x8x8x32xf32>
    %53 = vector.broadcast %2 : vector<1x8x1x32xf32> to vector<2x8x8x32xf32>
    %54 = arith.mulf %52, %53 : vector<2x8x8x32xf32>
    %55 = vector.shape_cast %54 : vector<2x8x8x32xf32> to vector<2x64x32xf32>
    %56 = vector.shape_cast %48 : vector<16x32xf32> to vector<2x8x32xf32>
    %57 = vector.shape_cast %49 : vector<16x32xf32> to vector<2x8x32xf32>
    "tpu.trace_start"() <{level = 10 : i32, message = "bmd,bkd->bmk"}> : () -> ()
    %cst_32 = arith.constant dense<0.000000e+00> : vector<2x64x8xf32>
    %58 = tpu.matmul %55, %56, %cst_32 {dimension_numbers = #tpu.dot_dimension_numbers<[2], [2], [1], [1], [0, 0, 0, 1, 1, 1], [0], [0]>} : vector<2x64x32xf32>, vector<2x8x32xf32>, vector<2x64x8xf32> -> vector<2x64x8xf32>
    "tpu.trace_stop"() : () -> ()
    %59 = vector.shape_cast %58 : vector<2x64x8xf32> to vector<2x8x8x8xf32>
    %60 = vector.broadcast %50 : vector<2x1x8x8xf32> to vector<2x8x8x8xf32>
    %61 = arith.addf %59, %60 : vector<2x8x8x8xf32>
    %cst_33 = arith.constant dense<0xFF800000> : vector<2x8x8xf32>
    %62 = vector.multi_reduction <maximumf>, %61, %cst_33 [3] : vector<2x8x8x8xf32> to vector<2x8x8xf32>
    %cst_34 = arith.constant 0xFF800000 : f32
    %63 = vector.broadcast %cst_34 : f32 to vector<2x8x8xf32>
    %64 = arith.maximumf %63, %62 : vector<2x8x8xf32>
    %65 = vector.shape_cast %64 : vector<2x8x8xf32> to vector<2x8x8x1xf32>
    %66 = vector.broadcast %65 : vector<2x8x8x1xf32> to vector<2x8x8x8xf32>
    %67 = arith.subf %61, %66 : vector<2x8x8x8xf32>
    %68 = math.exp %67 : vector<2x8x8x8xf32>
    %cst_35 = arith.constant dense<0.000000e+00> : vector<2x8x8xf32>
    %69 = vector.multi_reduction <add>, %68, %cst_35 [3] : vector<2x8x8x8xf32> to vector<2x8x8xf32>
    %70 = vector.shape_cast %69 : vector<2x8x8xf32> to vector<2x8x8x1xf32>
    %71 = vector.broadcast %70 : vector<2x8x8x1xf32> to vector<2x8x8x8xf32>
    %72 = arith.divf %68, %71 : vector<2x8x8x8xf32>
    %73 = vector.shape_cast %72 : vector<2x8x8x8xf32> to vector<2x64x8xf32>
    "tpu.trace_start"() <{level = 10 : i32, message = "bmk,bkd->bmd"}> : () -> ()
    %cst_36 = arith.constant dense<0.000000e+00> : vector<2x64x32xf32>
    %74 = tpu.matmul %73, %57, %cst_36 {dimension_numbers = #tpu.dot_dimension_numbers<[2], [1], [1], [2], [0, 0, 0, 1, 1, 2], [0], [0]>} : vector<2x64x8xf32>, vector<2x8x32xf32>, vector<2x64x32xf32> -> vector<2x64x32xf32>
    "tpu.trace_stop"() : () -> ()
    %75 = vector.shape_cast %74 : vector<2x64x32xf32> to vector<2x8x8x32xf32>
    %76 = vector.broadcast %2 : vector<1x8x1x32xf32> to vector<2x8x8x32xf32>
    %77 = arith.mulf %75, %76 : vector<2x8x8x32xf32>
    %cst_37 = arith.constant dense<0.000000e+00> : vector<2x8x32xf32>
    %78 = vector.multi_reduction <add>, %77, %cst_37 [1] : vector<2x8x8x32xf32> to vector<2x8x32xf32>
    %79 = vector.shape_cast %78 : vector<2x8x32xf32> to vector<16x32xf32>
    %cst_38 = arith.constant dense<0.000000e+00> : vector<16x32xf32>
    %80 = tpu.matmul %79, %10, %cst_38 {dimension_numbers = #tpu.dot_dimension_numbers<[1], [0], [0], [1], [0, 0, 1, 1], [], []>} : vector<16x32xf32>, vector<32x32xf32>, vector<16x32xf32> -> vector<16x32xf32>
    %81 = vector.broadcast %15 : vector<1x32xf32> to vector<16x32xf32>
    %82 = arith.addf %80, %81 : vector<16x32xf32>
    %83 = arith.addf %82, %0 : vector<16x32xf32>
    %cst_39 = arith.constant dense<0.000000e+00> : vector<16xf32>
    %84 = vector.multi_reduction <add>, %83, %cst_39 [1] : vector<16x32xf32> to vector<16xf32>
    %85 = vector.shape_cast %84 : vector<16xf32> to vector<16x1xf32>
    %cst_40 = arith.constant 3.200000e+01 : f32
    %86 = vector.broadcast %cst_40 : f32 to vector<16x1xf32>
    %87 = arith.divf %85, %86 : vector<16x1xf32>
    %88 = vector.broadcast %87 : vector<16x1xf32> to vector<16x32xf32>
    %89 = arith.subf %83, %88 : vector<16x32xf32>
    %90 = arith.mulf %89, %89 : vector<16x32xf32>
    %cst_41 = arith.constant dense<0.000000e+00> : vector<16xf32>
    %91 = vector.multi_reduction <add>, %90, %cst_41 [1] : vector<16x32xf32> to vector<16xf32>
    %92 = vector.shape_cast %91 : vector<16xf32> to vector<16x1xf32>
    %cst_42 = arith.constant 3.200000e+01 : f32
    %93 = vector.broadcast %cst_42 : f32 to vector<16x1xf32>
    %94 = arith.divf %92, %93 : vector<16x1xf32>
    %cst_43 = arith.constant 9.99999997E-7 : f32
    %95 = vector.broadcast %cst_43 : f32 to vector<16x1xf32>
    %96 = arith.addf %94, %95 : vector<16x1xf32>
    %97 = math.rsqrt %96 : vector<16x1xf32>
    %98 = vector.broadcast %97 : vector<16x1xf32> to vector<16x32xf32>
    %99 = arith.mulf %89, %98 : vector<16x32xf32>
    %100 = vector.broadcast %20 : vector<1x32xf32> to vector<16x32xf32>
    %101 = arith.mulf %99, %100 : vector<16x32xf32>
    %102 = vector.broadcast %21 : vector<1x32xf32> to vector<16x32xf32>
    %103 = arith.addf %101, %102 : vector<16x32xf32>
    %cst_44 = arith.constant dense<0.000000e+00> : vector<16x32xf32>
    %104 = tpu.matmul %103, %9, %cst_44 {dimension_numbers = #tpu.dot_dimension_numbers<[1], [0], [0], [1], [0, 0, 1, 1], [], []>} : vector<16x32xf32>, vector<32x32xf32>, vector<16x32xf32> -> vector<16x32xf32>
    %105 = vector.broadcast %14 : vector<1x32xf32> to vector<16x32xf32>
    %106 = arith.addf %104, %105 : vector<16x32xf32>
    %cst_45 = arith.constant dense<0.000000e+00> : vector<32x64xf32>
    %107 = tpu.matmul %1, %5, %cst_45 {dimension_numbers = #tpu.dot_dimension_numbers<[1], [0], [0], [1], [0, 0, 1, 1], [], []>} : vector<32x32xf32>, vector<32x64xf32>, vector<32x64xf32> -> vector<32x64xf32>
    %108 = vector.broadcast %7 : vector<1x64xf32> to vector<32x64xf32>
    %109 = arith.addf %107, %108 : vector<32x64xf32>
    %110 = vector.extract_strided_slice %109 {offsets = [0, 0], sizes = [32, 32], strides = [1, 1]} : vector<32x64xf32> to vector<32x32xf32>
    %111 = vector.extract_strided_slice %109 {offsets = [0, 32], sizes = [32, 32], strides = [1, 1]} : vector<32x64xf32> to vector<32x32xf32>
    %c0_46 = arith.constant 0 : index
    %c0_47 = arith.constant 0 : index
    %c0_48 = arith.constant 0 : index
    %c0_49 = arith.constant 0 : index
    %112 = vector.load %arg2[%c0_46, %c0_47, %c0_48, %c0_49] : memref<2x1x8x16xf32, #tpu.memory_space<vmem>>, vector<2x1x8x16xf32>
    %113 = vector.shape_cast %106 : vector<16x32xf32> to vector<2x1x8x32xf32>
    %114 = vector.broadcast %113 : vector<2x1x8x32xf32> to vector<2x8x8x32xf32>
    %115 = vector.broadcast %2 : vector<1x8x1x32xf32> to vector<2x8x8x32xf32>
    %116 = arith.mulf %114, %115 : vector<2x8x8x32xf32>
    %117 = vector.shape_cast %116 : vector<2x8x8x32xf32> to vector<2x64x32xf32>
    %118 = vector.shape_cast %110 : vector<32x32xf32> to vector<2x16x32xf32>
    %119 = vector.shape_cast %111 : vector<32x32xf32> to vector<2x16x32xf32>
    "tpu.trace_start"() <{level = 10 : i32, message = "bmd,bkd->bmk"}> : () -> ()
    %cst_50 = arith.constant dense<0.000000e+00> : vector<2x64x16xf32>
    %120 = tpu.matmul %117, %118, %cst_50 {dimension_numbers = #tpu.dot_dimension_numbers<[2], [2], [1], [1], [0, 0, 0, 1, 1, 1], [0], [0]>} : vector<2x64x32xf32>, vector<2x16x32xf32>, vector<2x64x16xf32> -> vector<2x64x16xf32>
    "tpu.trace_stop"() : () -> ()
    %121 = vector.shape_cast %120 : vector<2x64x16xf32> to vector<2x8x8x16xf32>
    %122 = vector.broadcast %112 : vector<2x1x8x16xf32> to vector<2x8x8x16xf32>
    %123 = arith.addf %121, %122 : vector<2x8x8x16xf32>
    %cst_51 = arith.constant dense<0xFF800000> : vector<2x8x8xf32>
    %124 = vector.multi_reduction <maximumf>, %123, %cst_51 [3] : vector<2x8x8x16xf32> to vector<2x8x8xf32>
    %cst_52 = arith.constant 0xFF800000 : f32
    %125 = vector.broadcast %cst_52 : f32 to vector<2x8x8xf32>
    %126 = arith.maximumf %125, %124 : vector<2x8x8xf32>
    %127 = vector.shape_cast %126 : vector<2x8x8xf32> to vector<2x8x8x1xf32>
    %128 = vector.broadcast %127 : vector<2x8x8x1xf32> to vector<2x8x8x16xf32>
    %129 = arith.subf %123, %128 : vector<2x8x8x16xf32>
    %130 = math.exp %129 : vector<2x8x8x16xf32>
    %cst_53 = arith.constant dense<0.000000e+00> : vector<2x8x8xf32>
    %131 = vector.multi_reduction <add>, %130, %cst_53 [3] : vector<2x8x8x16xf32> to vector<2x8x8xf32>
    %132 = vector.shape_cast %131 : vector<2x8x8xf32> to vector<2x8x8x1xf32>
    %133 = vector.broadcast %132 : vector<2x8x8x1xf32> to vector<2x8x8x16xf32>
    %134 = arith.divf %130, %133 : vector<2x8x8x16xf32>
    %135 = vector.shape_cast %134 : vector<2x8x8x16xf32> to vector<2x64x16xf32>
    "tpu.trace_start"() <{level = 10 : i32, message = "bmk,bkd->bmd"}> : () -> ()
    %cst_54 = arith.constant dense<0.000000e+00> : vector<2x64x32xf32>
    %136 = tpu.matmul %135, %119, %cst_54 {dimension_numbers = #tpu.dot_dimension_numbers<[2], [1], [1], [2], [0, 0, 0, 1, 1, 2], [0], [0]>} : vector<2x64x16xf32>, vector<2x16x32xf32>, vector<2x64x32xf32> -> vector<2x64x32xf32>
    "tpu.trace_stop"() : () -> ()
    %137 = vector.shape_cast %136 : vector<2x64x32xf32> to vector<2x8x8x32xf32>
    %138 = vector.broadcast %2 : vector<1x8x1x32xf32> to vector<2x8x8x32xf32>
    %139 = arith.mulf %137, %138 : vector<2x8x8x32xf32>
    %cst_55 = arith.constant dense<0.000000e+00> : vector<2x8x32xf32>
    %140 = vector.multi_reduction <add>, %139, %cst_55 [1] : vector<2x8x8x32xf32> to vector<2x8x32xf32>
    %141 = vector.shape_cast %140 : vector<2x8x32xf32> to vector<16x32xf32>
    %cst_56 = arith.constant dense<0.000000e+00> : vector<16x32xf32>
    %142 = tpu.matmul %141, %11, %cst_56 {dimension_numbers = #tpu.dot_dimension_numbers<[1], [0], [0], [1], [0, 0, 1, 1], [], []>} : vector<16x32xf32>, vector<32x32xf32>, vector<16x32xf32> -> vector<16x32xf32>
    %143 = vector.broadcast %16 : vector<1x32xf32> to vector<16x32xf32>
    %144 = arith.addf %142, %143 : vector<16x32xf32>
    %145 = arith.addf %144, %83 : vector<16x32xf32>
    %146 = vector.extract_strided_slice %134 {offsets = [0, 0, 0, 0], sizes = [2, 1, 8, 16], strides = [1, 1, 1, 1]} : vector<2x8x8x16xf32> to vector<2x1x8x16xf32>
    %147 = vector.shape_cast %146 : vector<2x1x8x16xf32> to vector<2x8x16xf32>
    %148 = vector.shape_cast %147 : vector<2x8x16xf32> to vector<16x16xf32>
    %cst_57 = arith.constant dense<0.000000e+00> : vector<16xf32>
    %149 = vector.multi_reduction <add>, %145, %cst_57 [1] : vector<16x32xf32> to vector<16xf32>
    %150 = vector.shape_cast %149 : vector<16xf32> to vector<16x1xf32>
    %cst_58 = arith.constant 3.200000e+01 : f32
    %151 = vector.broadcast %cst_58 : f32 to vector<16x1xf32>
    %152 = arith.divf %150, %151 : vector<16x1xf32>
    %153 = vector.broadcast %152 : vector<16x1xf32> to vector<16x32xf32>
    %154 = arith.subf %145, %153 : vector<16x32xf32>
    %155 = arith.mulf %154, %154 : vector<16x32xf32>
    %cst_59 = arith.constant dense<0.000000e+00> : vector<16xf32>
    %156 = vector.multi_reduction <add>, %155, %cst_59 [1] : vector<16x32xf32> to vector<16xf32>
    %157 = vector.shape_cast %156 : vector<16xf32> to vector<16x1xf32>
    %cst_60 = arith.constant 3.200000e+01 : f32
    %158 = vector.broadcast %cst_60 : f32 to vector<16x1xf32>
    %159 = arith.divf %157, %158 : vector<16x1xf32>
    %cst_61 = arith.constant 9.99999997E-7 : f32
    %160 = vector.broadcast %cst_61 : f32 to vector<16x1xf32>
    %161 = arith.addf %159, %160 : vector<16x1xf32>
    %162 = math.rsqrt %161 : vector<16x1xf32>
    %163 = vector.broadcast %162 : vector<16x1xf32> to vector<16x32xf32>
    %164 = arith.mulf %154, %163 : vector<16x32xf32>
    %165 = vector.broadcast %22 : vector<1x32xf32> to vector<16x32xf32>
    %166 = arith.mulf %164, %165 : vector<16x32xf32>
    %167 = vector.broadcast %23 : vector<1x32xf32> to vector<16x32xf32>
    %168 = arith.addf %166, %167 : vector<16x32xf32>
    %cst_62 = arith.constant dense<0.000000e+00> : vector<16x64xf32>
    %169 = tpu.matmul %168, %6, %cst_62 {dimension_numbers = #tpu.dot_dimension_numbers<[1], [0], [0], [1], [0, 0, 1, 1], [], []>} : vector<16x32xf32>, vector<32x64xf32>, vector<16x64xf32> -> vector<16x64xf32>
    %170 = vector.broadcast %8 : vector<1x64xf32> to vector<16x64xf32>
    %171 = arith.addf %169, %170 : vector<16x64xf32>
    %cst_63 = arith.constant 0.000000e+00 : f32
    %172 = vector.broadcast %cst_63 : f32 to vector<16x64xf32>
    %173 = arith.maximumf %171, %172 : vector<16x64xf32>
    %cst_64 = arith.constant dense<0.000000e+00> : vector<16x32xf32>
    %174 = tpu.matmul %173, %12, %cst_64 {dimension_numbers = #tpu.dot_dimension_numbers<[1], [0], [0], [1], [0, 0, 1, 1], [], []>} : vector<16x64xf32>, vector<64x32xf32>, vector<16x32xf32> -> vector<16x32xf32>
    %175 = vector.broadcast %17 : vector<1x32xf32> to vector<16x32xf32>
    %176 = arith.addf %174, %175 : vector<16x32xf32>
    %177 = arith.addf %176, %145 : vector<16x32xf32>
    %cst_65 = arith.constant 0.000000e+00 : f32
    %178 = vector.broadcast %cst_65 : f32 to vector<16x48xf32>
    %179 = tpu.concatenate %177, %43, %148, %178 in 1 : vector<16x32xf32>, vector<16x32xf32>, vector<16x16xf32>, vector<16x48xf32> -> vector<16x128xf32>
    %c0_66 = arith.constant 0 : index
    %c0_67 = arith.constant 0 : index
    %180 = vector.load %arg7[%c0_66, %c0_67] : memref<16x128xf32, #tpu.memory_space<vmem>>, vector<16x128xf32>
    tpu.vector_store %arg7[%c0_66, %c0_67], %179 {strides = array<i32>} : memref<16x128xf32, #tpu.memory_space<vmem>>, vector<16x128xf32>,
    return
  }
}

</mosaic_0001>

<llo_original>
// kernel: tpu_custom_call.1
$region0: #{tpu_custom_call.1}
  #allocation0 [shape = 'u32[]', space=smem, size = 0x4, offset = 0x4, fixed_abs, tag = 'smem constant byte address 0x4 - core index']
  #allocation1 [shape = 'u32[144,128]{1,0:T(1,128)}', space=vmem, size = 0x12000, scoped, tag = 'internal scratch']
  %s0 = inlined_call_operand.vmem [shape: f32[48,32], index: 0, kind: input, shape index: {}]
  %s1 = inlined_call_operand.vmem [shape: f32[2,1,8,8], index: 1, kind: input, shape index: {}]
  %s2 = inlined_call_operand.vmem [shape: f32[2,1,8,16], index: 2, kind: input, shape index: {}]
  %s3 = inlined_call_operand.vmem [shape: f32[1,8,1,32], index: 3, kind: input, shape index: {}]
  %s4 = inlined_call_operand.vmem [shape: f32[33,96], index: 4, kind: input, shape index: {}]
  %s5 = inlined_call_operand.vmem [shape: f32[66,64], index: 5, kind: input, shape index: {}]
  %s6 = inlined_call_operand.vmem [shape: f32[170,32], index: 6, kind: input, shape index: {}]
  %s7 = inlined_call_operand.hbm [shape: f32[16,128], index: 7, kind: output, shape index: {}]
  %s8 = sld [smem:[#allocation0]]
  $region38: #{tpu_custom_call.1} parent=0
    _
  %s10 = ssub.s32 1, %s8
  %s11 = scalar_select 0, %s10, %s8
  $region1: #{tpu_custom_call.1} parent=0
    #allocation2 [shape = 'u8[8192]{0}', space=vmem, size = 0x2000, scoped, tag = 'output window, operand 0, single buffered']
    #allocation3 [shape = 's32[1]{0}', space=sflag, size = 0x4, scoped, tag = 'scoped memory for tpu_custom_call.1']
    %12 = vsyncpa [#allocation3], 0
    // Predicated region
    $region2: #{tpu_custom_call.1} parent=1 // pred_check
      _
    $region3: #{tpu_custom_call.1} parent=1 // pred_check_branch
      %14 = sbr.rel (0) target = $region5
    $region4: #{tpu_custom_call.1} parent=1 // pred_region
      _
    $region5: #{tpu_custom_call.1} parent=1 // pred_fallthru
      _
    // Predicated region
    $region6: #{tpu_custom_call.1} parent=1 // pred_check
      _
    $region7: #{tpu_custom_call.1} parent=1 // pred_check_branch
      %16 = sbr.rel (0) target = $region9
    $region8: #{tpu_custom_call.1} parent=1 // pred_region
      _
    $region9: #{tpu_custom_call.1} parent=1 // pred_fallthru
      _
    // Predicated region
    $region10: #{tpu_custom_call.1} parent=1 // pred_check
      _
    $region11: #{tpu_custom_call.1} parent=1 // pred_check_branch
      %18 = sbr.rel (0) target = $region13
    $region12: #{tpu_custom_call.1} parent=1 // pred_region
      _
    $region13: #{tpu_custom_call.1} parent=1 // pred_fallthru
      _
    // Predicated region
    $region14: #{tpu_custom_call.1} parent=1 // pred_check
      _
    $region15: #{tpu_custom_call.1} parent=1 // pred_check_branch
      %20 = sbr.rel (0) target = $region17
    $region16: #{tpu_custom_call.1} parent=1 // pred_region
      _
    $region17: #{tpu_custom_call.1} parent=1 // pred_fallthru
      _
    // Predicated region
    $region18: #{tpu_custom_call.1} parent=1 // pred_check
      _
    $region19: #{tpu_custom_call.1} parent=1 // pred_check_branch
      %22 = sbr.rel (0) target = $region21
    $region20: #{tpu_custom_call.1} parent=1 // pred_region
      _
    $region21: #{tpu_custom_call.1} parent=1 // pred_fallthru
      _
    // Predicated region
    $region22: #{tpu_custom_call.1} parent=1 // pred_check
      _
    $region23: #{tpu_custom_call.1} parent=1 // pred_check_branch
      %24 = sbr.rel (0) target = $region25
    $region24: #{tpu_custom_call.1} parent=1 // pred_region
      _
    $region25: #{tpu_custom_call.1} parent=1 // pred_fallthru
      _
    // Predicated region
    $region26: #{tpu_custom_call.1} parent=1 // pred_check
      _
    $region27: #{tpu_custom_call.1} parent=1 // pred_check_branch
      %26 = sbr.rel (0) target = $region29
    $region28: #{tpu_custom_call.1} parent=1 // pred_region
      _
    $region29: #{tpu_custom_call.1} parent=1 // pred_fallthru
      _
    %v27 = vld [vmem:[%s0] sm:$0xff]
    %v28 = vld [vmem:[%s0 + $0x8] sm:$0xff]
    %v29 = vld [vmem:[%s0 + $0x10] sm:$0xff]
    %v30 = vld [vmem:[%s0 + $0x18] sm:$0xff]
    %v31 = vld [vmem:[%s0 + $0x20] sm:$0xff]
    %v32 = vld [vmem:[%s0 + $0x28] sm:$0xff]
    %v33 = vld [vmem:[%s3] sm:$0x1]
    %v34 = vld [vmem:[%s3 + $0x1] sm:$0x1]
    %v35 = vld [vmem:[%s3 + $0x2] sm:$0x1]
    %v36 = vld [vmem:[%s3 + $0x3] sm:$0x1]
    %v37 = vld [vmem:[%s3 + $0x4] sm:$0x1]
    %v38 = vld [vmem:[%s3 + $0x5] sm:$0x1]
    %v39 = vld [vmem:[%s3 + $0x6] sm:$0x1]
    %v40 = vld [vmem:[%s3 + $0x7] sm:$0x1]
    %v41 = vld [vmem:[%s4] sm:$0xff]
    %v42 = vld [vmem:[%s4 + $0x8] sm:$0xff]
    %v43 = vld [vmem:[%s4 + $0x10] sm:$0xff]
    %v44 = vld [vmem:[%s4 + $0x18] sm:$0xff]
    %v45 = vld [vmem:[%s4 + $0x20] sm:$0x1]
    %v46 = vld [vmem:[%s5] sm:$0xff]
    %v47 = vld [vmem:[%s5 + $0x8] sm:$0xff]
    %v48 = vld [vmem:[%s5 + $0x10] sm:$0xff]
    %v49 = vld [vmem:[%s5 + $0x18] sm:$0xff]
    %v50 = vld [vmem:[%s5 + $0x20] sm:$0xff]
    %v51 = vld [vmem:[%s5 + $0x28] sm:$0xff]
    %v52 = vld [vmem:[%s5 + $0x30] sm:$0xff]
    %v53 = vld [vmem:[%s5 + $0x38] sm:$0xff]
    %v54 = vld [vmem:[%s5 + $0x40] sm:$0x1]
    %v55 = vld [vmem:[%s5 + $0x41] sm:$0x1]
    %v56 = vld [vmem:[%s6] sm:$0xff]
    %v57 = vld [vmem:[%s6 + $0x8] sm:$0xff]
    %v58 = vld [vmem:[%s6 + $0x10] sm:$0xff]
    %v59 = vld [vmem:[%s6 + $0x18] sm:$0xff]
    %v60 = vld [vmem:[%s6 + $0x20] sm:$0xff]
    %v61 = vld [vmem:[%s6 + $0x28] sm:$0xff]
    %v62 = vld [vmem:[%s6 + $0x30] sm:$0xff]
    %v63 = vld [vmem:[%s6 + $0x38] sm:$0xff]
    %v64 = vld [vmem:[%s6 + $0x40] sm:$0xff]
    %v65 = vld [vmem:[%s6 + $0x48] sm:$0xff]
    %v66 = vld [vmem:[%s6 + $0x50] sm:$0xff]
    %v67 = vld [vmem:[%s6 + $0x58] sm:$0xff]
    %v68 = vld [vmem:[%s6 + $0x60] sm:$0xff]
    %v69 = vld [vmem:[%s6 + $0x68] sm:$0xff]
    %v70 = vld [vmem:[%s6 + $0x70] sm:$0xff]
    %v71 = vld [vmem:[%s6 + $0x78] sm:$0xff]
    %v72 = vld [vmem:[%s6 + $0x80] sm:$0xff]
    %v73 = vld [vmem:[%s6 + $0x88] sm:$0xff]
    %v74 = vld [vmem:[%s6 + $0x90] sm:$0xff]
    %v75 = vld [vmem:[%s6 + $0x98] sm:$0xff]
    %v76 = vld [vmem:[%s6 + $0xa0] sm:$0xff]
    %v77 = vld [vmem:[%s6 + $0xa8] sm:$0x3]
    %vm78 = vcmask 261120
    %v79 = vsel %vm78, %v27, 0.0
    %80 = vadd.xlane.f32.xlu0 %v79
    %v81 = vpop.xlane.xlu0 %80
    %v82 = vsel %vm78, %v28, 0.0
    %83 = vadd.xlane.f32.xlu0 %v82
    %v84 = vpop.xlane.xlu0 %83
    %v85 = vrcp.pop 32.0
    %v86 = vmul.f32 %v81, %v85
    %v87 = vmul.f32 %v84, %v85
    %v88 = vsub.f32 %v27, %v86
    %v89 = vsub.f32 %v28, %v87
    %v90 = vmul.f32 %v88, %v88
    %v91 = vmul.f32 %v89, %v89
    %v92 = vsel %vm78, %v90, 0.0
    %93 = vadd.xlane.f32.xlu0 %v92
    %v94 = vpop.xlane.xlu0 %93
    %v95 = vsel %vm78, %v91, 0.0
    %96 = vadd.xlane.f32.xlu0 %v95
    %v97 = vpop.xlane.xlu0 %96
    %v98 = vmul.f32 %v94, %v85
    %v99 = vmul.f32 %v97, %v85
    %v100 = vadd.f32 %v98, 1e-06
    %v101 = vadd.f32 %v99, 1e-06
    %v102 = vrsqrt.pop %v100
    %v103 = vrsqrt.pop %v101
    %v104 = vmul.f32 %v88, %v102
    %v105 = vmul.f32 %v89, %v103
    %v106 = vlaneseq
    %v107 = vshrl.u32 %v106, 7
    %v108 = vsub.s32 4, %v107
    %v109 = vrot.slane %v76, %v108
    %v110 = vmul.f32 %v104, %v109
    %v111 = vmul.f32 %v105, %v109
    %v112 = vlaneseq
    %v113 = vshrl.u32 %v112, 7
    %v114 = vsub.s32 5, %v113
    %v115 = vrot.slane %v76, %v114
    %v116 = vadd.f32 %v110, %v115
    %v117 = vadd.f32 %v111, %v115
    %v118 = vlaneseq
    %v119 = vshrl.u32 %v118, 7
    %v120 = vsub.s32 0, %v119
    %v121 = vrot.slane %v45, %v120
    %v123 = vsel %vm78, %v116, 0
    %v126 = vsel %vm78, %v117, 0
    %128 = vmatprep.subr.mxu0 0.0
    %129 = vmatpush1.msra.mxu0 %v41
    %130 = vmatprep.subr.mxu0 0.0
    %131 = vmatpush1.msra.mxu0 %v42
    %132 = vmatprep.subr.mxu0 0.0
    %133 = vmatpush1.msra.mxu0 %v43
    %134 = vmatprep.subr.mxu0 0.0
    %135 = vmatpush1.msra.mxu0 %v44
    %136 = vmatprep.subr.mxu0 0.0
    %137 = vmatpush1.msra.mxu0 0.0
    %138 = vmatprep.subr.mxu0 0.0
    %139 = vmatpush1.msra.mxu0 0.0
    %140 = vmatprep.subr.mxu0 0.0
    %141 = vmatpush1.msra.mxu0 0.0
    %142 = vmatprep.subr.mxu0 0.0
    %143 = vmatpush1.msra.mxu0 0.0
    %144 = vmatprep.subr.mxu0 0.0
    %145 = vmatpush1.msra.mxu0 0.0
    %146 = vmatprep.subr.mxu0 0.0
    %147 = vmatpush1.msra.mxu0 0.0
    %148 = vmatprep.subr.mxu0 0.0
    %149 = vmatpush1.msra.mxu0 0.0
    %150 = vmatprep.subr.mxu0 0.0
    %151 = vmatpush1.msra.mxu0 0.0
    %152 = vmatprep.subr.mxu0 0.0
    %153 = vmatpush1.msra.mxu0 0.0
    %154 = vmatprep.subr.mxu0 0.0
    %155 = vmatpush1.msra.mxu0 0.0
    %156 = vmatprep.subr.mxu0 0.0
    %157 = vmatpush1.msra.mxu0 0.0
    %158 = vmatprep.subr.mxu0 0.0
    %159 = vmatpush1.msra.mxu0 0.0
    %160 = vmatprep.subr.mxu0 0.0
    %161 = vmatpush1.msra.mxu0 0.0
    %162 = vmatprep.subr.mxu0 0.0
    %163 = vmatpush1.msra.mxu0 0.0
    %164 = vmatprep.subr.mxu0 0.0
    %165 = vmatpush1.msra.mxu0 0.0
    %166 = vmatprep.subr.mxu0 0.0
    %167 = vmatpush1.msra.mxu0 0.0
    %168 = vmatprep.subr.mxu0 0.0
    %169 = vmatpush1.msra.mxu0 0.0
    %170 = vmatprep.subr.mxu0 0.0
    %171 = vmatpush1.msra.mxu0 0.0
    %172 = vmatprep.subr.mxu0 0.0
    %173 = vmatpush1.msra.mxu0 0.0
    %174 = vmatprep.subr.mxu0 0.0
    %175 = vmatpush1.msra.mxu0 0.0
    %176 = vmatprep.subr.mxu0 0.0
    %177 = vmatpush1.msra.mxu0 0.0
    %178 = vmatprep.subr.mxu0 0.0
    %179 = vmatpush1.msra.mxu0 0.0
    %180 = vmatprep.subr.mxu0 0.0
    %181 = vmatpush1.msra.mxu0 0.0
    %182 = vmatprep.subr.mxu0 0.0
    %183 = vmatpush1.msra.mxu0 0.0
    %184 = vmatprep.subr.mxu0 0.0
    %185 = vmatpush1.msra.mxu0 0.0
    %186 = vmatprep.subr.mxu0 0.0
    %187 = vmatpush1.msra.mxu0 0.0
    %188 = vmatprep.subr.mxu0 0.0
    %189 = vmatpush1.msra.mxu0 0.0
    %190 = vmatprep.subr.mxu0 0.0
    %191 = vmatpush1.msra.mxu0 0.0
    %192 = vmatprep.mubr.f32.mxu0 0.0
    %193 = vmatmul.mubr.f32.gmra.mrb[0].mxu0 %v123
    %v194 = vpop.f32.mrb[0].mxu0
    %v195 = vadd.f32 %v121, %v194
    %v196 = vpop.f32.mrb[0].mxu0
    %197 = vmatprep.mubr.f32.mxu0 0.0
    %198 = vmatmul.mubr.f32.gmra.mrb[0].mxu0 %v126
    %v199 = vpop.f32.mrb[0].mxu0
    %v200 = vadd.f32 %v121, %v199
    %v201 = vpop.f32.mrb[0].mxu0
    %202 = vdwg.mxu0
    %v203 = vld [vmem:[%s1] sm:$0xff]
    %v204 = vld [vmem:[%s1 + $0x8] sm:$0xff]
    %v213 = vlaneseq
    %v214 = vshrl.u32 %v213, 7
    %v215 = vsub.s32 0, %v214
    %v216 = vrot.slane %v33, %v215
    %v217 = vlaneseq
    %v218 = vshrl.u32 %v217, 7
    %v219 = vsub.s32 0, %v218
    %v220 = vrot.slane %v34, %v219
    %v221 = vlaneseq
    %v222 = vshrl.u32 %v221, 7
    %v223 = vsub.s32 0, %v222
    %v224 = vrot.slane %v35, %v223
    %v225 = vlaneseq
    %v226 = vshrl.u32 %v225, 7
    %v227 = vsub.s32 0, %v226
    %v228 = vrot.slane %v36, %v227
    %v229 = vlaneseq
    %v230 = vshrl.u32 %v229, 7
    %v231 = vsub.s32 0, %v230
    %v232 = vrot.slane %v37, %v231
    %v233 = vlaneseq
    %v234 = vshrl.u32 %v233, 7
    %v235 = vsub.s32 0, %v234
    %v236 = vrot.slane %v38, %v235
    %v237 = vlaneseq
    %v238 = vshrl.u32 %v237, 7
    %v239 = vsub.s32 0, %v238
    %v240 = vrot.slane %v39, %v239
    %v241 = vlaneseq
    %v242 = vshrl.u32 %v241, 7
    %v243 = vsub.s32 0, %v242
    %v244 = vrot.slane %v40, %v243
    %v253 = vmul.f32 %v195, %v216
    %v254 = vmul.f32 %v195, %v220
    %v255 = vmul.f32 %v195, %v224
    %v256 = vmul.f32 %v195, %v228
    %v257 = vmul.f32 %v195, %v232
    %v258 = vmul.f32 %v195, %v236
    %v259 = vmul.f32 %v195, %v240
    %v260 = vmul.f32 %v195, %v244
    %v261 = vmul.f32 %v200, %v216
    %v262 = vmul.f32 %v200, %v220
    %v263 = vmul.f32 %v200, %v224
    %v264 = vmul.f32 %v200, %v228
    %v265 = vmul.f32 %v200, %v232
    %v266 = vmul.f32 %v200, %v236
    %v267 = vmul.f32 %v200, %v240
    %v268 = vmul.f32 %v200, %v244
    %270 = vrot.lane.b32.xlu0 %v195, 96
    %v271 = vpop.permute.xlu0 %270
    %v273 = vsel %vm78, %v253, 0
    %v276 = vsel %vm78, %v254, 0
    %v279 = vsel %vm78, %v255, 0
    %v282 = vsel %vm78, %v256, 0
    %v285 = vsel %vm78, %v257, 0
    %v288 = vsel %vm78, %v258, 0
    %v291 = vsel %vm78, %v259, 0
    %v294 = vsel %vm78, %v260, 0
    %v296 = vsel %vm78, %v271, 0
    %298 = vmatprep.subr.mxu0 0.0
    %299 = vmatpush1.xpose.msra.mxu0 %v296
    %300 = vmatprep.subr.mxu0 0.0
    %301 = vmatpush1.xpose.msra.mxu0 0.0
    %302 = vmatprep.subr.mxu0 0.0
    %303 = vmatpush1.xpose.msra.mxu0 0.0
    %304 = vmatprep.subr.mxu0 0.0
    %305 = vmatpush1.xpose.msra.mxu0 0.0
    %306 = vmatprep.subr.mxu0 0.0
    %307 = vmatpush1.xpose.msra.mxu0 0.0
    %308 = vmatprep.subr.mxu0 0.0
    %309 = vmatpush1.xpose.msra.mxu0 0.0
    %310 = vmatprep.subr.mxu0 0.0
    %311 = vmatpush1.xpose.msra.mxu0 0.0
    %312 = vmatprep.subr.mxu0 0.0
    %313 = vmatpush1.xpose.msra.mxu0 0.0
    %314 = vmatprep.subr.mxu0 0.0
    %315 = vmatpush1.xpose.msra.mxu0 0.0
    %316 = vmatprep.subr.mxu0 0.0
    %317 = vmatpush1.xpose.msra.mxu0 0.0
    %318 = vmatprep.subr.mxu0 0.0
    %319 = vmatpush1.xpose.msra.mxu0 0.0
    %320 = vmatprep.subr.mxu0 0.0
    %321 = vmatpush1.xpose.msra.mxu0 0.0
    %322 = vmatprep.subr.mxu0 0.0
    %323 = vmatpush1.xpose.msra.mxu0 0.0
    %324 = vmatprep.subr.mxu0 0.0
    %325 = vmatpush1.xpose.msra.mxu0 0.0
    %326 = vmatprep.subr.mxu0 0.0
    %327 = vmatpush1.xpose.msra.mxu0 0.0
    %328 = vmatprep.subr.mxu0 0.0
    %329 = vmatpush1.xpose.msra.mxu0 0.0
    %330 = vmatprep.subr.mxu0 0.0
    %331 = vmatpush1.xpose.msra.mxu0 0.0
    %332 = vmatprep.subr.mxu0 0.0
    %333 = vmatpush1.xpose.msra.mxu0 0.0
    %334 = vmatprep.subr.mxu0 0.0
    %335 = vmatpush1.xpose.msra.mxu0 0.0
    %336 = vmatprep.subr.mxu0 0.0
    %337 = vmatpush1.xpose.msra.mxu0 0.0
    %338 = vmatprep.subr.mxu0 0.0
    %339 = vmatpush1.xpose.msra.mxu0 0.0
    %340 = vmatprep.subr.mxu0 0.0
    %341 = vmatpush1.xpose.msra.mxu0 0.0
    %342 = vmatprep.subr.mxu0 0.0
    %343 = vmatpush1.xpose.msra.mxu0 0.0
    %344 = vmatprep.subr.mxu0 0.0
    %345 = vmatpush1.xpose.msra.mxu0 0.0
    %346 = vmatprep.subr.mxu0 0.0
    %347 = vmatpush1.xpose.msra.mxu0 0.0
    %348 = vmatprep.subr.mxu0 0.0
    %349 = vmatpush1.xpose.msra.mxu0 0.0
    %350 = vmatprep.subr.mxu0 0.0
    %351 = vmatpush1.xpose.msra.mxu0 0.0
    %352 = vmatprep.subr.mxu0 0.0
    %353 = vmatpush1.xpose.msra.mxu0 0.0
    %354 = vmatprep.subr.mxu0 0.0
    %355 = vmatpush1.xpose.msra.mxu0 0.0
    %356 = vmatprep.subr.mxu0 0.0
    %357 = vmatpush1.xpose.msra.mxu0 0.0
    %358 = vmatprep.subr.mxu0 0.0
    %359 = vmatpush1.xpose.msra.mxu0 0.0
    %360 = vmatprep.subr.mxu0 0.0
    %361 = vmatpush1.xpose.msra.mxu0 0.0
    %362 = vmatprep.mubr.f32.mxu0 0.0
    %363 = vmatmul.mubr.f32.gmra.mrb[0].mxu0 %v273
    %v364 = vpop.f32.mrb[0].mxu0
    %v365 = vadd.f32 0.0, %v364
    %v366 = vpop.f32.mrb[0].mxu0
    %367 = vmatprep.mubr.f32.mxu0 0.0
    %368 = vmatmul.mubr.f32.gmra.mrb[0].mxu0 %v276
    %v369 = vpop.f32.mrb[0].mxu0
    %v370 = vadd.f32 0.0, %v369
    %v371 = vpop.f32.mrb[0].mxu0
    %372 = vmatprep.mubr.f32.mxu0 0.0
    %373 = vmatmul.mubr.f32.gmra.mrb[0].mxu0 %v279
    %v374 = vpop.f32.mrb[0].mxu0
    %v375 = vadd.f32 0.0, %v374
    %v376 = vpop.f32.mrb[0].mxu0
    %377 = vmatprep.mubr.f32.mxu0 0.0
    %378 = vmatmul.mubr.f32.gmra.mrb[0].mxu0 %v282
    %v379 = vpop.f32.mrb[0].mxu0
    %v380 = vadd.f32 0.0, %v379
    %v381 = vpop.f32.mrb[0].mxu0
    %382 = vmatprep.mubr.f32.mxu0 0.0
    %383 = vmatmul.mubr.f32.gmra.mrb[0].mxu0 %v285
    %v384 = vpop.f32.mrb[0].mxu0
    %v385 = vadd.f32 0.0, %v384
    %v386 = vpop.f32.mrb[0].mxu0
    %387 = vmatprep.mubr.f32.mxu0 0.0
    %388 = vmatmul.mubr.f32.gmra.mrb[0].mxu0 %v288
    %v389 = vpop.f32.mrb[0].mxu0
    %v390 = vadd.f32 0.0, %v389
    %v391 = vpop.f32.mrb[0].mxu0
    %392 = vmatprep.mubr.f32.mxu0 0.0
    %393 = vmatmul.mubr.f32.gmra.mrb[0].mxu0 %v291
    %v394 = vpop.f32.mrb[0].mxu0
    %v395 = vadd.f32 0.0, %v394
    %v396 = vpop.f32.mrb[0].mxu0
    %397 = vmatprep.mubr.f32.mxu0 0.0
    %398 = vmatmul.mubr.f32.gmra.mrb[0].mxu0 %v294
    %v399 = vpop.f32.mrb[0].mxu0
    %v400 = vadd.f32 0.0, %v399
    %v401 = vpop.f32.mrb[0].mxu0
    %402 = vdwg.mxu0
    %404 = vrot.lane.b32.xlu0 %v200, 96
    %v405 = vpop.permute.xlu0 %404
    %v407 = vsel %vm78, %v261, 0
    %v410 = vsel %vm78, %v262, 0
    %v413 = vsel %vm78, %v263, 0
    %v416 = vsel %vm78, %v264, 0
    %v419 = vsel %vm78, %v265, 0
    %v422 = vsel %vm78, %v266, 0
    %v425 = vsel %vm78, %v267, 0
    %v428 = vsel %vm78, %v268, 0
    %v430 = vsel %vm78, %v405, 0
    %432 = vmatprep.subr.mxu0 0.0
    %433 = vmatpush1.xpose.msra.mxu0 %v430
    %434 = vmatprep.subr.mxu0 0.0
    %435 = vmatpush1.xpose.msra.mxu0 0.0
    %436 = vmatprep.subr.mxu0 0.0
    %437 = vmatpush1.xpose.msra.mxu0 0.0
    %438 = vmatprep.subr.mxu0 0.0
    %439 = vmatpush1.xpose.msra.mxu0 0.0
    %440 = vmatprep.subr.mxu0 0.0
    %441 = vmatpush1.xpose.msra.mxu0 0.0
    %442 = vmatprep.subr.mxu0 0.0
    %443 = vmatpush1.xpose.msra.mxu0 0.0
    %444 = vmatprep.subr.mxu0 0.0
    %445 = vmatpush1.xpose.msra.mxu0 0.0
    %446 = vmatprep.subr.mxu0 0.0
    %447 = vmatpush1.xpose.msra.mxu0 0.0
    %448 = vmatprep.subr.mxu0 0.0
    %449 = vmatpush1.xpose.msra.mxu0 0.0
    %450 = vmatprep.subr.mxu0 0.0
    %451 = vmatpush1.xpose.msra.mxu0 0.0
    %452 = vmatprep.subr.mxu0 0.0
    %453 = vmatpush1.xpose.msra.mxu0 0.0
    %454 = vmatprep.subr.mxu0 0.0
    %455 = vmatpush1.xpose.msra.mxu0 0.0
    %456 = vmatprep.subr.mxu0 0.0
    %457 = vmatpush1.xpose.msra.mxu0 0.0
    %458 = vmatprep.subr.mxu0 0.0
    %459 = vmatpush1.xpose.msra.mxu0 0.0
    %460 = vmatprep.subr.mxu0 0.0
    %461 = vmatpush1.xpose.msra.mxu0 0.0
    %462 = vmatprep.subr.mxu0 0.0
    %463 = vmatpush1.xpose.msra.mxu0 0.0
    %464 = vmatprep.subr.mxu0 0.0
    %465 = vmatpush1.xpose.msra.mxu0 0.0
    %466 = vmatprep.subr.mxu0 0.0
    %467 = vmatpush1.xpose.msra.mxu0 0.0
    %468 = vmatprep.subr.mxu0 0.0
    %469 = vmatpush1.xpose.msra.mxu0 0.0
    %470 = vmatprep.subr.mxu0 0.0
    %471 = vmatpush1.xpose.msra.mxu0 0.0
    %472 = vmatprep.subr.mxu0 0.0
    %473 = vmatpush1.xpose.msra.mxu0 0.0
    %474 = vmatprep.subr.mxu0 0.0
    %475 = vmatpush1.xpose.msra.mxu0 0.0
    %476 = vmatprep.subr.mxu0 0.0
    %477 = vmatpush1.xpose.msra.mxu0 0.0
    %478 = vmatprep.subr.mxu0 0.0
    %479 = vmatpush1.xpose.msra.mxu0 0.0
    %480 = vmatprep.subr.mxu0 0.0
    %481 = vmatpush1.xpose.msra.mxu0 0.0
    %482 = vmatprep.subr.mxu0 0.0
    %483 = vmatpush1.xpose.msra.mxu0 0.0
    %484 = vmatprep.subr.mxu0 0.0
    %485 = vmatpush1.xpose.msra.mxu0 0.0
    %486 = vmatprep.subr.mxu0 0.0
    %487 = vmatpush1.xpose.msra.mxu0 0.0
    %488 = vmatprep.subr.mxu0 0.0
    %489 = vmatpush1.xpose.msra.mxu0 0.0
    %490 = vmatprep.subr.mxu0 0.0
    %491 = vmatpush1.xpose.msra.mxu0 0.0
    %492 = vmatprep.subr.mxu0 0.0
    %493 = vmatpush1.xpose.msra.mxu0 0.0
    %494 = vmatprep.subr.mxu0 0.0
    %495 = vmatpush1.xpose.msra.mxu0 0.0
    %496 = vmatprep.mubr.f32.mxu0 0.0
    %497 = vmatmul.mubr.f32.gmra.mrb[0].mxu0 %v407
    %v498 = vpop.f32.mrb[0].mxu0
    %v499 = vadd.f32 0.0, %v498
    %v500 = vpop.f32.mrb[0].mxu0
    %501 = vmatprep.mubr.f32.mxu0 0.0
    %502 = vmatmul.mubr.f32.gmra.mrb[0].mxu0 %v410
    %v503 = vpop.f32.mrb[0].mxu0
    %v504 = vadd.f32 0.0, %v503
    %v505 = vpop.f32.mrb[0].mxu0
    %506 = vmatprep.mubr.f32.mxu0 0.0
    %507 = vmatmul.mubr.f32.gmra.mrb[0].mxu0 %v413
    %v508 = vpop.f32.mrb[0].mxu0
    %v509 = vadd.f32 0.0, %v508
    %v510 = vpop.f32.mrb[0].mxu0
    %511 = vmatprep.mubr.f32.mxu0 0.0
    %512 = vmatmul.mubr.f32.gmra.mrb[0].mxu0 %v416
    %v513 = vpop.f32.mrb[0].mxu0
    %v514 = vadd.f32 0.0, %v513
    %v515 = vpop.f32.mrb[0].mxu0
    %516 = vmatprep.mubr.f32.mxu0 0.0
    %517 = vmatmul.mubr.f32.gmra.mrb[0].mxu0 %v419
    %v518 = vpop.f32.mrb[0].mxu0
    %v519 = vadd.f32 0.0, %v518
    %v520 = vpop.f32.mrb[0].mxu0
    %521 = vmatprep.mubr.f32.mxu0 0.0
    %522 = vmatmul.mubr.f32.gmra.mrb[0].mxu0 %v422
    %v523 = vpop.f32.mrb[0].mxu0
    %v524 = vadd.f32 0.0, %v523
    %v525 = vpop.f32.mrb[0].mxu0
    %526 = vmatprep.mubr.f32.mxu0 0.0
    %527 = vmatmul.mubr.f32.gmra.mrb[0].mxu0 %v425
    %v528 = vpop.f32.mrb[0].mxu0
    %v529 = vadd.f32 0.0, %v528
    %v530 = vpop.f32.mrb[0].mxu0
    %531 = vmatprep.mubr.f32.mxu0 0.0
    %532 = vmatmul.mubr.f32.gmra.mrb[0].mxu0 %v428
    %v533 = vpop.f32.mrb[0].mxu0
    %v534 = vadd.f32 0.0, %v533
    %v535 = vpop.f32.mrb[0].mxu0
    %536 = vdwg.mxu0
    %v537 = vadd.f32 %v365, %v203
    %v538 = vadd.f32 %v370, %v203
    %v539 = vadd.f32 %v375, %v203
    %v540 = vadd.f32 %v380, %v203
    %v541 = vadd.f32 %v385, %v203
    %v542 = vadd.f32 %v390, %v203
    %v543 = vadd.f32 %v395, %v203
    %v544 = vadd.f32 %v400, %v203
    %v545 = vadd.f32 %v499, %v204
    %v546 = vadd.f32 %v504, %v204
    %v547 = vadd.f32 %v509, %v204
    %v548 = vadd.f32 %v514, %v204
    %v549 = vadd.f32 %v519, %v204
    %v550 = vadd.f32 %v524, %v204
    %v551 = vadd.f32 %v529, %v204
    %v552 = vadd.f32 %v534, %v204
    %vm553 = vcmask 64512
    %v554 = vsel %vm553, %v537, -inf
    %555 = vmax.xlane.f32.xlu0 %v554
    %v556 = vpop.xlane.xlu0 %555
    %v557 = vsel %vm553, %v538, -inf
    %558 = vmax.xlane.f32.xlu0 %v557
    %v559 = vpop.xlane.xlu0 %558
    %v560 = vsel %vm553, %v539, -inf
    %561 = vmax.xlane.f32.xlu0 %v560
    %v562 = vpop.xlane.xlu0 %561
    %v563 = vsel %vm553, %v540, -inf
    %564 = vmax.xlane.f32.xlu0 %v563
    %v565 = vpop.xlane.xlu0 %564
    %v566 = vsel %vm553, %v541, -inf
    %567 = vmax.xlane.f32.xlu0 %v566
    %v568 = vpop.xlane.xlu0 %567
    %v569 = vsel %vm553, %v542, -inf
    %570 = vmax.xlane.f32.xlu0 %v569
    %v571 = vpop.xlane.xlu0 %570
    %v572 = vsel %vm553, %v543, -inf
    %573 = vmax.xlane.f32.xlu0 %v572
    %v574 = vpop.xlane.xlu0 %573
    %v575 = vsel %vm553, %v544, -inf
    %576 = vmax.xlane.f32.xlu0 %v575
    %v577 = vpop.xlane.xlu0 %576
    %v578 = vsel %vm553, %v545, -inf
    %579 = vmax.xlane.f32.xlu0 %v578
    %v580 = vpop.xlane.xlu0 %579
    %v581 = vsel %vm553, %v546, -inf
    %582 = vmax.xlane.f32.xlu0 %v581
    %v583 = vpop.xlane.xlu0 %582
    %v584 = vsel %vm553, %v547, -inf
    %585 = vmax.xlane.f32.xlu0 %v584
    %v586 = vpop.xlane.xlu0 %585
    %v587 = vsel %vm553, %v548, -inf
    %588 = vmax.xlane.f32.xlu0 %v587
    %v589 = vpop.xlane.xlu0 %588
    %v590 = vsel %vm553, %v549, -inf
    %591 = vmax.xlane.f32.xlu0 %v590
    %v592 = vpop.xlane.xlu0 %591
    %v593 = vsel %vm553, %v550, -inf
    %594 = vmax.xlane.f32.xlu0 %v593
    %v595 = vpop.xlane.xlu0 %594
    %v596 = vsel %vm553, %v551, -inf
    %597 = vmax.xlane.f32.xlu0 %v596
    %v598 = vpop.xlane.xlu0 %597
    %v599 = vsel %vm553, %v552, -inf
    %600 = vmax.xlane.f32.xlu0 %v599
    %v601 = vpop.xlane.xlu0 %600
    %v602 = vsub.f32 %v537, %v556
    %v603 = vsub.f32 %v538, %v559
    %v604 = vsub.f32 %v539, %v562
    %v605 = vsub.f32 %v540, %v565
    %v606 = vsub.f32 %v541, %v568
    %v607 = vsub.f32 %v542, %v571
    %v608 = vsub.f32 %v543, %v574
    %v609 = vsub.f32 %v544, %v577
    %v610 = vsub.f32 %v545, %v580
    %v611 = vsub.f32 %v546, %v583
    %v612 = vsub.f32 %v547, %v586
    %v613 = vsub.f32 %v548, %v589
    %v614 = vsub.f32 %v549, %v592
    %v615 = vsub.f32 %v550, %v595
    %v616 = vsub.f32 %v551, %v598
    %v617 = vsub.f32 %v552, %v601
    %v618 = vmul.f32 %v602, 1.442695
    %v619 = vpow.pop %v618
    %v620 = vmul.f32 %v603, 1.442695
    %v621 = vpow.pop %v620
    %v622 = vmul.f32 %v604, 1.442695
    %v623 = vpow.pop %v622
    %v624 = vmul.f32 %v605, 1.442695
    %v625 = vpow.pop %v624
    %v626 = vmul.f32 %v606, 1.442695
    %v627 = vpow.pop %v626
    %v628 = vmul.f32 %v607, 1.442695
    %v629 = vpow.pop %v628
    %v630 = vmul.f32 %v608, 1.442695
    %v631 = vpow.pop %v630
    %v632 = vmul.f32 %v609, 1.442695
    %v633 = vpow.pop %v632
    %v634 = vmul.f32 %v610, 1.442695
    %v635 = vpow.pop %v634
    %v636 = vmul.f32 %v611, 1.442695
    %v637 = vpow.pop %v636
    %v638 = vmul.f32 %v612, 1.442695
    %v639 = vpow.pop %v638
    %v640 = vmul.f32 %v613, 1.442695
    %v641 = vpow.pop %v640
    %v642 = vmul.f32 %v614, 1.442695
    %v643 = vpow.pop %v642
    %v644 = vmul.f32 %v615, 1.442695
    %v645 = vpow.pop %v644
    %v646 = vmul.f32 %v616, 1.442695
    %v647 = vpow.pop %v646
    %v648 = vmul.f32 %v617, 1.442695
    %v649 = vpow.pop %v648
    %v650 = vsel %vm553, %v619, 0.0
    %651 = vadd.xlane.f32.xlu0 %v650
    %v652 = vpop.xlane.xlu0 %651
    %v653 = vsel %vm553, %v621, 0.0
    %654 = vadd.xlane.f32.xlu0 %v653
    %v655 = vpop.xlane.xlu0 %654
    %v656 = vsel %vm553, %v623, 0.0
    %657 = vadd.xlane.f32.xlu0 %v656
    %v658 = vpop.xlane.xlu0 %657
    %v659 = vsel %vm553, %v625, 0.0
    %660 = vadd.xlane.f32.xlu0 %v659
    %v661 = vpop.xlane.xlu0 %660
    %v662 = vsel %vm553, %v627, 0.0
    %663 = vadd.xlane.f32.xlu0 %v662
    %v664 = vpop.xlane.xlu0 %663
    %v665 = vsel %vm553, %v629, 0.0
    %666 = vadd.xlane.f32.xlu0 %v665
    %v667 = vpop.xlane.xlu0 %666
    %v668 = vsel %vm553, %v631, 0.0
    %669 = vadd.xlane.f32.xlu0 %v668
    %v670 = vpop.xlane.xlu0 %669
    %v671 = vsel %vm553, %v633, 0.0
    %672 = vadd.xlane.f32.xlu0 %v671
    %v673 = vpop.xlane.xlu0 %672
    %v674 = vsel %vm553, %v635, 0.0
    %675 = vadd.xlane.f32.xlu0 %v674
    %v676 = vpop.xlane.xlu0 %675
    %v677 = vsel %vm553, %v637, 0.0
    %678 = vadd.xlane.f32.xlu0 %v677
    %v679 = vpop.xlane.xlu0 %678
    %v680 = vsel %vm553, %v639, 0.0
    %681 = vadd.xlane.f32.xlu0 %v680
    %v682 = vpop.xlane.xlu0 %681
    %v683 = vsel %vm553, %v641, 0.0
    %684 = vadd.xlane.f32.xlu0 %v683
    %v685 = vpop.xlane.xlu0 %684
    %v686 = vsel %vm553, %v643, 0.0
    %687 = vadd.xlane.f32.xlu0 %v686
    %v688 = vpop.xlane.xlu0 %687
    %v689 = vsel %vm553, %v645, 0.0
    %690 = vadd.xlane.f32.xlu0 %v689
    %v691 = vpop.xlane.xlu0 %690
    %v692 = vsel %vm553, %v647, 0.0
    %693 = vadd.xlane.f32.xlu0 %v692
    %v694 = vpop.xlane.xlu0 %693
    %v695 = vsel %vm553, %v649, 0.0
    %696 = vadd.xlane.f32.xlu0 %v695
    %v697 = vpop.xlane.xlu0 %696
    %v698 = vrcp.pop %v652
    %v699 = vmul.f32 %v619, %v698
    %v700 = vrcp.pop %v655
    %v701 = vmul.f32 %v621, %v700
    %v702 = vrcp.pop %v658
    %v703 = vmul.f32 %v623, %v702
    %v704 = vrcp.pop %v661
    %v705 = vmul.f32 %v625, %v704
    %v706 = vrcp.pop %v664
    %v707 = vmul.f32 %v627, %v706
    %v708 = vrcp.pop %v667
    %v709 = vmul.f32 %v629, %v708
    %v710 = vrcp.pop %v670
    %v711 = vmul.f32 %v631, %v710
    %v712 = vrcp.pop %v673
    %v713 = vmul.f32 %v633, %v712
    %v714 = vrcp.pop %v676
    %v715 = vmul.f32 %v635, %v714
    %v716 = vrcp.pop %v679
    %v717 = vmul.f32 %v637, %v716
    %v718 = vrcp.pop %v682
    %v719 = vmul.f32 %v639, %v718
    %v720 = vrcp.pop %v685
    %v721 = vmul.f32 %v641, %v720
    %v722 = vrcp.pop %v688
    %v723 = vmul.f32 %v643, %v722
    %v724 = vrcp.pop %v691
    %v725 = vmul.f32 %v645, %v724
    %v726 = vrcp.pop %v694
    %v727 = vmul.f32 %v647, %v726
    %v728 = vrcp.pop %v697
    %v729 = vmul.f32 %v649, %v728
    %730 = vrot.lane.b32.xlu0 %v195, 64
    %v731 = vpop.permute.xlu0 %730
    %v734 = vsel %vm553, %v699, 0
    %v737 = vsel %vm553, %v701, 0
    %v740 = vsel %vm553, %v703, 0
    %v743 = vsel %vm553, %v705, 0
    %v746 = vsel %vm553, %v707, 0
    %v749 = vsel %vm553, %v709, 0
    %v752 = vsel %vm553, %v711, 0
    %v755 = vsel %vm553, %v713, 0
    %757 = vmatprep.subr.mxu0 0.0
    %758 = vmatpush1.msra.mxu0 %v731
    %759 = vmatprep.subr.mxu0 0.0
    %760 = vmatpush1.msra.mxu0 0.0
    %761 = vmatprep.subr.mxu0 0.0
    %762 = vmatpush1.msra.mxu0 0.0
    %763 = vmatprep.subr.mxu0 0.0
    %764 = vmatpush1.msra.mxu0 0.0
    %765 = vmatprep.subr.mxu0 0.0
    %766 = vmatpush1.msra.mxu0 0.0
    %767 = vmatprep.subr.mxu0 0.0
    %768 = vmatpush1.msra.mxu0 0.0
    %769 = vmatprep.subr.mxu0 0.0
    %770 = vmatpush1.msra.mxu0 0.0
    %771 = vmatprep.subr.mxu0 0.0
    %772 = vmatpush1.msra.mxu0 0.0
    %773 = vmatprep.subr.mxu0 0.0
    %774 = vmatpush1.msra.mxu0 0.0
    %775 = vmatprep.subr.mxu0 0.0
    %776 = vmatpush1.msra.mxu0 0.0
    %777 = vmatprep.subr.mxu0 0.0
    %778 = vmatpush1.msra.mxu0 0.0
    %779 = vmatprep.subr.mxu0 0.0
    %780 = vmatpush1.msra.mxu0 0.0
    %781 = vmatprep.subr.mxu0 0.0
    %782 = vmatpush1.msra.mxu0 0.0
    %783 = vmatprep.subr.mxu0 0.0
    %784 = vmatpush1.msra.mxu0 0.0
    %785 = vmatprep.subr.mxu0 0.0
    %786 = vmatpush1.msra.mxu0 0.0
    %787 = vmatprep.subr.mxu0 0.0
    %788 = vmatpush1.msra.mxu0 0.0
    %789 = vmatprep.subr.mxu0 0.0
    %790 = vmatpush1.msra.mxu0 0.0
    %791 = vmatprep.subr.mxu0 0.0
    %792 = vmatpush1.msra.mxu0 0.0
    %793 = vmatprep.subr.mxu0 0.0
    %794 = vmatpush1.msra.mxu0 0.0
    %795 = vmatprep.subr.mxu0 0.0
    %796 = vmatpush1.msra.mxu0 0.0
    %797 = vmatprep.subr.mxu0 0.0
    %798 = vmatpush1.msra.mxu0 0.0
    %799 = vmatprep.subr.mxu0 0.0
    %800 = vmatpush1.msra.mxu0 0.0
    %801 = vmatprep.subr.mxu0 0.0
    %802 = vmatpush1.msra.mxu0 0.0
    %803 = vmatprep.subr.mxu0 0.0
    %804 = vmatpush1.msra.mxu0 0.0
    %805 = vmatprep.subr.mxu0 0.0
    %806 = vmatpush1.msra.mxu0 0.0
    %807 = vmatprep.subr.mxu0 0.0
    %808 = vmatpush1.msra.mxu0 0.0
    %809 = vmatprep.subr.mxu0 0.0
    %810 = vmatpush1.msra.mxu0 0.0
    %811 = vmatprep.subr.mxu0 0.0
    %812 = vmatpush1.msra.mxu0 0.0
    %813 = vmatprep.subr.mxu0 0.0
    %814 = vmatpush1.msra.mxu0 0.0
    %815 = vmatprep.subr.mxu0 0.0
    %816 = vmatpush1.msra.mxu0 0.0
    %817 = vmatprep.subr.mxu0 0.0
    %818 = vmatpush1.msra.mxu0 0.0
    %819 = vmatprep.subr.mxu0 0.0
    %820 = vmatpush1.msra.mxu0 0.0
    %821 = vmatprep.mubr.f32.mxu0 0.0
    %822 = vmatmul.mubr.f32.gmra.mrb[0].mxu0 %v734
    %v823 = vpop.f32.mrb[0].mxu0
    %v824 = vadd.f32 0.0, %v823
    %v825 = vpop.f32.mrb[0].mxu0
    %826 = vmatprep.mubr.f32.mxu0 0.0
    %827 = vmatmul.mubr.f32.gmra.mrb[0].mxu0 %v737
    %v828 = vpop.f32.mrb[0].mxu0
    %v829 = vadd.f32 0.0, %v828
    %v830 = vpop.f32.mrb[0].mxu0
    %831 = vmatprep.mubr.f32.mxu0 0.0
    %832 = vmatmul.mubr.f32.gmra.mrb[0].mxu0 %v740
    %v833 = vpop.f32.mrb[0].mxu0
    %v834 = vadd.f32 0.0, %v833
    %v835 = vpop.f32.mrb[0].mxu0
    %836 = vmatprep.mubr.f32.mxu0 0.0
    %837 = vmatmul.mubr.f32.gmra.mrb[0].mxu0 %v743
    %v838 = vpop.f32.mrb[0].mxu0
    %v839 = vadd.f32 0.0, %v838
    %v840 = vpop.f32.mrb[0].mxu0
    %841 = vmatprep.mubr.f32.mxu0 0.0
    %842 = vmatmul.mubr.f32.gmra.mrb[0].mxu0 %v746
    %v843 = vpop.f32.mrb[0].mxu0
    %v844 = vadd.f32 0.0, %v843
    %v845 = vpop.f32.mrb[0].mxu0
    %846 = vmatprep.mubr.f32.mxu0 0.0
    %847 = vmatmul.mubr.f32.gmra.mrb[0].mxu0 %v749
    %v848 = vpop.f32.mrb[0].mxu0
    %v849 = vadd.f32 0.0, %v848
    %v850 = vpop.f32.mrb[0].mxu0
    %851 = vmatprep.mubr.f32.mxu0 0.0
    %852 = vmatmul.mubr.f32.gmra.mrb[0].mxu0 %v752
    %v853 = vpop.f32.mrb[0].mxu0
    %v854 = vadd.f32 0.0, %v853
    %v855 = vpop.f32.mrb[0].mxu0
    %856 = vmatprep.mubr.f32.mxu0 0.0
    %857 = vmatmul.mubr.f32.gmra.mrb[0].mxu0 %v755
    %v858 = vpop.f32.mrb[0].mxu0
    %v859 = vadd.f32 0.0, %v858
    %v860 = vpop.f32.mrb[0].mxu0
    %861 = vdwg.mxu0
    %862 = vrot.lane.b32.xlu0 %v200, 64
    %v863 = vpop.permute.xlu0 %862
    %v866 = vsel %vm553, %v715, 0
    %v869 = vsel %vm553, %v717, 0
    %v872 = vsel %vm553, %v719, 0
    %v875 = vsel %vm553, %v721, 0
    %v878 = vsel %vm553, %v723, 0
    %v881 = vsel %vm553, %v725, 0
    %v884 = vsel %vm553, %v727, 0
    %v887 = vsel %vm553, %v729, 0
    %889 = vmatprep.subr.mxu0 0.0
    %890 = vmatpush1.msra.mxu0 %v863
    %891 = vmatprep.subr.mxu0 0.0
    %892 = vmatpush1.msra.mxu0 0.0
    %893 = vmatprep.subr.mxu0 0.0
    %894 = vmatpush1.msra.mxu0 0.0
    %895 = vmatprep.subr.mxu0 0.0
    %896 = vmatpush1.msra.mxu0 0.0
    %897 = vmatprep.subr.mxu0 0.0
    %898 = vmatpush1.msra.mxu0 0.0
    %899 = vmatprep.subr.mxu0 0.0
    %900 = vmatpush1.msra.mxu0 0.0
    %901 = vmatprep.subr.mxu0 0.0
    %902 = vmatpush1.msra.mxu0 0.0
    %903 = vmatprep.subr.mxu0 0.0
    %904 = vmatpush1.msra.mxu0 0.0
    %905 = vmatprep.subr.mxu0 0.0
    %906 = vmatpush1.msra.mxu0 0.0
    %907 = vmatprep.subr.mxu0 0.0
    %908 = vmatpush1.msra.mxu0 0.0
    %909 = vmatprep.subr.mxu0 0.0
    %910 = vmatpush1.msra.mxu0 0.0
    %911 = vmatprep.subr.mxu0 0.0
    %912 = vmatpush1.msra.mxu0 0.0
    %913 = vmatprep.subr.mxu0 0.0
    %914 = vmatpush1.msra.mxu0 0.0
    %915 = vmatprep.subr.mxu0 0.0
    %916 = vmatpush1.msra.mxu0 0.0
    %917 = vmatprep.subr.mxu0 0.0
    %918 = vmatpush1.msra.mxu0 0.0
    %919 = vmatprep.subr.mxu0 0.0
    %920 = vmatpush1.msra.mxu0 0.0
    %921 = vmatprep.subr.mxu0 0.0
    %922 = vmatpush1.msra.mxu0 0.0
    %923 = vmatprep.subr.mxu0 0.0
    %924 = vmatpush1.msra.mxu0 0.0
    %925 = vmatprep.subr.mxu0 0.0
    %926 = vmatpush1.msra.mxu0 0.0
    %927 = vmatprep.subr.mxu0 0.0
    %928 = vmatpush1.msra.mxu0 0.0
    %929 = vmatprep.subr.mxu0 0.0
    %930 = vmatpush1.msra.mxu0 0.0
    %931 = vmatprep.subr.mxu0 0.0
    %932 = vmatpush1.msra.mxu0 0.0
    %933 = vmatprep.subr.mxu0 0.0
    %934 = vmatpush1.msra.mxu0 0.0
    %935 = vmatprep.subr.mxu0 0.0
    %936 = vmatpush1.msra.mxu0 0.0
    %937 = vmatprep.subr.mxu0 0.0
    %938 = vmatpush1.msra.mxu0 0.0
    %939 = vmatprep.subr.mxu0 0.0
    %940 = vmatpush1.msra.mxu0 0.0
    %941 = vmatprep.subr.mxu0 0.0
    %942 = vmatpush1.msra.mxu0 0.0
    %943 = vmatprep.subr.mxu0 0.0
    %944 = vmatpush1.msra.mxu0 0.0
    %945 = vmatprep.subr.mxu0 0.0
    %946 = vmatpush1.msra.mxu0 0.0
    %947 = vmatprep.subr.mxu0 0.0
    %948 = vmatpush1.msra.mxu0 0.0
    %949 = vmatprep.subr.mxu0 0.0
    %950 = vmatpush1.msra.mxu0 0.0
    %951 = vmatprep.subr.mxu0 0.0
    %952 = vmatpush1.msra.mxu0 0.0
    %953 = vmatprep.mubr.f32.mxu0 0.0
    %954 = vmatmul.mubr.f32.gmra.mrb[0].mxu0 %v866
    %v955 = vpop.f32.mrb[0].mxu0
    %v956 = vadd.f32 0.0, %v955
    %v957 = vpop.f32.mrb[0].mxu0
    %958 = vmatprep.mubr.f32.mxu0 0.0
    %959 = vmatmul.mubr.f32.gmra.mrb[0].mxu0 %v869
    %v960 = vpop.f32.mrb[0].mxu0
    %v961 = vadd.f32 0.0, %v960
    %v962 = vpop.f32.mrb[0].mxu0
    %963 = vmatprep.mubr.f32.mxu0 0.0
    %964 = vmatmul.mubr.f32.gmra.mrb[0].mxu0 %v872
    %v965 = vpop.f32.mrb[0].mxu0
    %v966 = vadd.f32 0.0, %v965
    %v967 = vpop.f32.mrb[0].mxu0
    %968 = vmatprep.mubr.f32.mxu0 0.0
    %969 = vmatmul.mubr.f32.gmra.mrb[0].mxu0 %v875
    %v970 = vpop.f32.mrb[0].mxu0
    %v971 = vadd.f32 0.0, %v970
    %v972 = vpop.f32.mrb[0].mxu0
    %973 = vmatprep.mubr.f32.mxu0 0.0
    %974 = vmatmul.mubr.f32.gmra.mrb[0].mxu0 %v878
    %v975 = vpop.f32.mrb[0].mxu0
    %v976 = vadd.f32 0.0, %v975
    %v977 = vpop.f32.mrb[0].mxu0
    %978 = vmatprep.mubr.f32.mxu0 0.0
    %979 = vmatmul.mubr.f32.gmra.mrb[0].mxu0 %v881
    %v980 = vpop.f32.mrb[0].mxu0
    %v981 = vadd.f32 0.0, %v980
    %v982 = vpop.f32.mrb[0].mxu0
    %983 = vmatprep.mubr.f32.mxu0 0.0
    %984 = vmatmul.mubr.f32.gmra.mrb[0].mxu0 %v884
    %v985 = vpop.f32.mrb[0].mxu0
    %v986 = vadd.f32 0.0, %v985
    %v987 = vpop.f32.mrb[0].mxu0
    %988 = vmatprep.mubr.f32.mxu0 0.0
    %989 = vmatmul.mubr.f32.gmra.mrb[0].mxu0 %v887
    %v990 = vpop.f32.mrb[0].mxu0
    %v991 = vadd.f32 0.0, %v990
    %v992 = vpop.f32.mrb[0].mxu0
    %993 = vdwg.mxu0
    %v994 = vmul.f32 %v824, %v216
    %v995 = vmul.f32 %v829, %v220
    %v996 = vmul.f32 %v834, %v224
    %v997 = vmul.f32 %v839, %v228
    %v998 = vmul.f32 %v844, %v232
    %v999 = vmul.f32 %v849, %v236
    %v1000 = vmul.f32 %v854, %v240
    %v1001 = vmul.f32 %v859, %v244
    %v1002 = vmul.f32 %v956, %v216
    %v1003 = vmul.f32 %v961, %v220
    %v1004 = vmul.f32 %v966, %v224
    %v1005 = vmul.f32 %v971, %v228
    %v1006 = vmul.f32 %v976, %v232
    %v1007 = vmul.f32 %v981, %v236
    %v1008 = vmul.f32 %v986, %v240
    %v1009 = vmul.f32 %v991, %v244
    %v1010 = vsel %vm78, %v994, 0.0
    %v1011 = vsel %vm78, %v995, 0.0
    %v1012 = vadd.f32 %v1010, %v1011
    %v1013 = vsel %vm78, %v996, 0.0
    %v1014 = vadd.f32 %v1012, %v1013
    %v1015 = vsel %vm78, %v997, 0.0
    %v1016 = vadd.f32 %v1014, %v1015
    %v1017 = vsel %vm78, %v998, 0.0
    %v1018 = vadd.f32 %v1016, %v1017
    %v1019 = vsel %vm78, %v999, 0.0
    %v1020 = vadd.f32 %v1018, %v1019
    %v1021 = vsel %vm78, %v1000, 0.0
    %v1022 = vadd.f32 %v1020, %v1021
    %v1023 = vsel %vm78, %v1001, 0.0
    %v1024 = vadd.f32 %v1022, %v1023
    %v1025 = vsel %vm78, %v1002, 0.0
    %v1026 = vsel %vm78, %v1003, 0.0
    %v1027 = vadd.f32 %v1025, %v1026
    %v1028 = vsel %vm78, %v1004, 0.0
    %v1029 = vadd.f32 %v1027, %v1028
    %v1030 = vsel %vm78, %v1005, 0.0
    %v1031 = vadd.f32 %v1029, %v1030
    %v1032 = vsel %vm78, %v1006, 0.0
    %v1033 = vadd.f32 %v1031, %v1032
    %v1034 = vsel %vm78, %v1007, 0.0
    %v1035 = vadd.f32 %v1033, %v1034
    %v1036 = vsel %vm78, %v1008, 0.0
    %v1037 = vadd.f32 %v1035, %v1036
    %v1038 = vsel %vm78, %v1009, 0.0
    %v1039 = vadd.f32 %v1037, %v1038
    %v1040 = vlaneseq
    %v1041 = vshrl.u32 %v1040, 7
    %v1042 = vsub.s32 1, %v1041
    %v1043 = vrot.slane %v76, %v1042
    %v1045 = vsel %vm78, %v1024, 0
    %v1048 = vsel %vm78, %v1039, 0
    %1050 = vmatprep.subr.mxu0 0.0
    %1051 = vmatpush1.msra.mxu0 %v60
    %1052 = vmatprep.subr.mxu0 0.0
    %1053 = vmatpush1.msra.mxu0 %v61
    %1054 = vmatprep.subr.mxu0 0.0
    %1055 = vmatpush1.msra.mxu0 %v62
    %1056 = vmatprep.subr.mxu0 0.0
    %1057 = vmatpush1.msra.mxu0 %v63
    %1058 = vmatprep.subr.mxu0 0.0
    %1059 = vmatpush1.msra.mxu0 0.0
    %1060 = vmatprep.subr.mxu0 0.0
    %1061 = vmatpush1.msra.mxu0 0.0
    %1062 = vmatprep.subr.mxu0 0.0
    %1063 = vmatpush1.msra.mxu0 0.0
    %1064 = vmatprep.subr.mxu0 0.0
    %1065 = vmatpush1.msra.mxu0 0.0
    %1066 = vmatprep.subr.mxu0 0.0
    %1067 = vmatpush1.msra.mxu0 0.0
    %1068 = vmatprep.subr.mxu0 0.0
    %1069 = vmatpush1.msra.mxu0 0.0
    %1070 = vmatprep.subr.mxu0 0.0
    %1071 = vmatpush1.msra.mxu0 0.0
    %1072 = vmatprep.subr.mxu0 0.0
    %1073 = vmatpush1.msra.mxu0 0.0
    %1074 = vmatprep.subr.mxu0 0.0
    %1075 = vmatpush1.msra.mxu0 0.0
    %1076 = vmatprep.subr.mxu0 0.0
    %1077 = vmatpush1.msra.mxu0 0.0
    %1078 = vmatprep.subr.mxu0 0.0
    %1079 = vmatpush1.msra.mxu0 0.0
    %1080 = vmatprep.subr.mxu0 0.0
    %1081 = vmatpush1.msra.mxu0 0.0
    %1082 = vmatprep.subr.mxu0 0.0
    %1083 = vmatpush1.msra.mxu0 0.0
    %1084 = vmatprep.subr.mxu0 0.0
    %1085 = vmatpush1.msra.mxu0 0.0
    %1086 = vmatprep.subr.mxu0 0.0
    %1087 = vmatpush1.msra.mxu0 0.0
    %1088 = vmatprep.subr.mxu0 0.0
    %1089 = vmatpush1.msra.mxu0 0.0
    %1090 = vmatprep.subr.mxu0 0.0
    %1091 = vmatpush1.msra.mxu0 0.0
    %1092 = vmatprep.subr.mxu0 0.0
    %1093 = vmatpush1.msra.mxu0 0.0
    %1094 = vmatprep.subr.mxu0 0.0
    %1095 = vmatpush1.msra.mxu0 0.0
    %1096 = vmatprep.subr.mxu0 0.0
    %1097 = vmatpush1.msra.mxu0 0.0
    %1098 = vmatprep.subr.mxu0 0.0
    %1099 = vmatpush1.msra.mxu0 0.0
    %1100 = vmatprep.subr.mxu0 0.0
    %1101 = vmatpush1.msra.mxu0 0.0
    %1102 = vmatprep.subr.mxu0 0.0
    %1103 = vmatpush1.msra.mxu0 0.0
    %1104 = vmatprep.subr.mxu0 0.0
    %1105 = vmatpush1.msra.mxu0 0.0
    %1106 = vmatprep.subr.mxu0 0.0
    %1107 = vmatpush1.msra.mxu0 0.0
    %1108 = vmatprep.subr.mxu0 0.0
    %1109 = vmatpush1.msra.mxu0 0.0
    %1110 = vmatprep.subr.mxu0 0.0
    %1111 = vmatpush1.msra.mxu0 0.0
    %1112 = vmatprep.subr.mxu0 0.0
    %1113 = vmatpush1.msra.mxu0 0.0
    %1114 = vmatprep.mubr.f32.mxu0 0.0
    %1115 = vmatmul.mubr.f32.gmra.mrb[0].mxu0 %v1045
    %v1116 = vpop.f32.mrb[0].mxu0
    %v1117 = vadd.f32 %v1043, %v1116
    %v1118 = vpop.f32.mrb[0].mxu0
    %1119 = vmatprep.mubr.f32.mxu0 0.0
    %1120 = vmatmul.mubr.f32.gmra.mrb[0].mxu0 %v1048
    %v1121 = vpop.f32.mrb[0].mxu0
    %v1122 = vadd.f32 %v1043, %v1121
    %v1123 = vpop.f32.mrb[0].mxu0
    %1124 = vdwg.mxu0
    %v1125 = vadd.f32 %v1117, %v27
    %v1126 = vadd.f32 %v1122, %v28
    %v1127 = vsel %vm78, %v1125, 0.0
    %1128 = vadd.xlane.f32.xlu0 %v1127
    %v1129 = vpop.xlane.xlu0 %1128
    %v1130 = vsel %vm78, %v1126, 0.0
    %1131 = vadd.xlane.f32.xlu0 %v1130
    %v1132 = vpop.xlane.xlu0 %1131
    %v1133 = vmul.f32 %v1129, %v85
    %v1134 = vmul.f32 %v1132, %v85
    %v1135 = vsub.f32 %v1125, %v1133
    %v1136 = vsub.f32 %v1126, %v1134
    %v1137 = vmul.f32 %v1135, %v1135
    %v1138 = vmul.f32 %v1136, %v1136
    %v1139 = vsel %vm78, %v1137, 0.0
    %1140 = vadd.xlane.f32.xlu0 %v1139
    %v1141 = vpop.xlane.xlu0 %1140
    %v1142 = vsel %vm78, %v1138, 0.0
    %1143 = vadd.xlane.f32.xlu0 %v1142
    %v1144 = vpop.xlane.xlu0 %1143
    %v1145 = vmul.f32 %v1141, %v85
    %v1146 = vmul.f32 %v1144, %v85
    %v1147 = vadd.f32 %v1145, 1e-06
    %v1148 = vadd.f32 %v1146, 1e-06
    %v1149 = vrsqrt.pop %v1147
    %v1150 = vrsqrt.pop %v1148
    %v1151 = vmul.f32 %v1135, %v1149
    %v1152 = vmul.f32 %v1136, %v1150
    %v1153 = vlaneseq
    %v1154 = vshrl.u32 %v1153, 7
    %v1155 = vsub.s32 6, %v1154
    %v1156 = vrot.slane %v76, %v1155
    %v1157 = vmul.f32 %v1151, %v1156
    %v1158 = vmul.f32 %v1152, %v1156
    %v1159 = vlaneseq
    %v1160 = vshrl.u32 %v1159, 7
    %v1161 = vsub.s32 7, %v1160
    %v1162 = vrot.slane %v76, %v1161
    %v1163 = vadd.f32 %v1157, %v1162
    %v1164 = vadd.f32 %v1158, %v1162
    %v1165 = vlaneseq
    %v1166 = vshrl.u32 %v1165, 7
    %v1167 = vsub.s32 0, %v1166
    %v1168 = vrot.slane %v76, %v1167
    %v1170 = vsel %vm78, %v1163, 0
    %v1173 = vsel %vm78, %v1164, 0
    %1175 = vmatprep.subr.mxu0 0.0
    %1176 = vmatpush1.msra.mxu0 %v56
    %1177 = vmatprep.subr.mxu0 0.0
    %1178 = vmatpush1.msra.mxu0 %v57
    %1179 = vmatprep.subr.mxu0 0.0
    %1180 = vmatpush1.msra.mxu0 %v58
    %1181 = vmatprep.subr.mxu0 0.0
    %1182 = vmatpush1.msra.mxu0 %v59
    %1183 = vmatprep.subr.mxu0 0.0
    %1184 = vmatpush1.msra.mxu0 0.0
    %1185 = vmatprep.subr.mxu0 0.0
    %1186 = vmatpush1.msra.mxu0 0.0
    %1187 = vmatprep.subr.mxu0 0.0
    %1188 = vmatpush1.msra.mxu0 0.0
    %1189 = vmatprep.subr.mxu0 0.0
    %1190 = vmatpush1.msra.mxu0 0.0
    %1191 = vmatprep.subr.mxu0 0.0
    %1192 = vmatpush1.msra.mxu0 0.0
    %1193 = vmatprep.subr.mxu0 0.0
    %1194 = vmatpush1.msra.mxu0 0.0
    %1195 = vmatprep.subr.mxu0 0.0
    %1196 = vmatpush1.msra.mxu0 0.0
    %1197 = vmatprep.subr.mxu0 0.0
    %1198 = vmatpush1.msra.mxu0 0.0
    %1199 = vmatprep.subr.mxu0 0.0
    %1200 = vmatpush1.msra.mxu0 0.0
    %1201 = vmatprep.subr.mxu0 0.0
    %1202 = vmatpush1.msra.mxu0 0.0
    %1203 = vmatprep.subr.mxu0 0.0
    %1204 = vmatpush1.msra.mxu0 0.0
    %1205 = vmatprep.subr.mxu0 0.0
    %1206 = vmatpush1.msra.mxu0 0.0
    %1207 = vmatprep.subr.mxu0 0.0
    %1208 = vmatpush1.msra.mxu0 0.0
    %1209 = vmatprep.subr.mxu0 0.0
    %1210 = vmatpush1.msra.mxu0 0.0
    %1211 = vmatprep.subr.mxu0 0.0
    %1212 = vmatpush1.msra.mxu0 0.0
    %1213 = vmatprep.subr.mxu0 0.0
    %1214 = vmatpush1.msra.mxu0 0.0
    %1215 = vmatprep.subr.mxu0 0.0
    %1216 = vmatpush1.msra.mxu0 0.0
    %1217 = vmatprep.subr.mxu0 0.0
    %1218 = vmatpush1.msra.mxu0 0.0
    %1219 = vmatprep.subr.mxu0 0.0
    %1220 = vmatpush1.msra.mxu0 0.0
    %1221 = vmatprep.subr.mxu0 0.0
    %1222 = vmatpush1.msra.mxu0 0.0
    %1223 = vmatprep.subr.mxu0 0.0
    %1224 = vmatpush1.msra.mxu0 0.0
    %1225 = vmatprep.subr.mxu0 0.0
    %1226 = vmatpush1.msra.mxu0 0.0
    %1227 = vmatprep.subr.mxu0 0.0
    %1228 = vmatpush1.msra.mxu0 0.0
    %1229 = vmatprep.subr.mxu0 0.0
    %1230 = vmatpush1.msra.mxu0 0.0
    %1231 = vmatprep.subr.mxu0 0.0
    %1232 = vmatpush1.msra.mxu0 0.0
    %1233 = vmatprep.subr.mxu0 0.0
    %1234 = vmatpush1.msra.mxu0 0.0
    %1235 = vmatprep.subr.mxu0 0.0
    %1236 = vmatpush1.msra.mxu0 0.0
    %1237 = vmatprep.subr.mxu0 0.0
    %1238 = vmatpush1.msra.mxu0 0.0
    %1239 = vmatprep.mubr.f32.mxu0 0.0
    %1240 = vmatmul.mubr.f32.gmra.mrb[0].mxu0 %v1170
    %v1241 = vpop.f32.mrb[0].mxu0
    %v1242 = vadd.f32 %v1168, %v1241
    %v1243 = vpop.f32.mrb[0].mxu0
    %1244 = vmatprep.mubr.f32.mxu0 0.0
    %1245 = vmatmul.mubr.f32.gmra.mrb[0].mxu0 %v1173
    %v1246 = vpop.f32.mrb[0].mxu0
    %v1247 = vadd.f32 %v1168, %v1246
    %v1248 = vpop.f32.mrb[0].mxu0
    %1249 = vdwg.mxu0
    %v1250 = vlaneseq
    %v1251 = vshrl.u32 %v1250, 7
    %v1252 = vsub.s32 0, %v1251
    %v1253 = vrot.slane %v54, %v1252
    %v1255 = vsel %vm78, %v29, 0
    %v1258 = vsel %vm78, %v30, 0
    %v1261 = vsel %vm78, %v31, 0
    %v1264 = vsel %vm78, %v32, 0
    %1266 = vmatprep.subr.mxu0 0.0
    %1267 = vmatpush1.msra.mxu0 %v46
    %1268 = vmatprep.subr.mxu0 0.0
    %1269 = vmatpush1.msra.mxu0 %v47
    %1270 = vmatprep.subr.mxu0 0.0
    %1271 = vmatpush1.msra.mxu0 %v48
    %1272 = vmatprep.subr.mxu0 0.0
    %1273 = vmatpush1.msra.mxu0 %v49
    %1274 = vmatprep.subr.mxu0 0.0
    %1275 = vmatpush1.msra.mxu0 0.0
    %1276 = vmatprep.subr.mxu0 0.0
    %1277 = vmatpush1.msra.mxu0 0.0
    %1278 = vmatprep.subr.mxu0 0.0
    %1279 = vmatpush1.msra.mxu0 0.0
    %1280 = vmatprep.subr.mxu0 0.0
    %1281 = vmatpush1.msra.mxu0 0.0
    %1282 = vmatprep.subr.mxu0 0.0
    %1283 = vmatpush1.msra.mxu0 0.0
    %1284 = vmatprep.subr.mxu0 0.0
    %1285 = vmatpush1.msra.mxu0 0.0
    %1286 = vmatprep.subr.mxu0 0.0
    %1287 = vmatpush1.msra.mxu0 0.0
    %1288 = vmatprep.subr.mxu0 0.0
    %1289 = vmatpush1.msra.mxu0 0.0
    %1290 = vmatprep.subr.mxu0 0.0
    %1291 = vmatpush1.msra.mxu0 0.0
    %1292 = vmatprep.subr.mxu0 0.0
    %1293 = vmatpush1.msra.mxu0 0.0
    %1294 = vmatprep.subr.mxu0 0.0
    %1295 = vmatpush1.msra.mxu0 0.0
    %1296 = vmatprep.subr.mxu0 0.0
    %1297 = vmatpush1.msra.mxu0 0.0
    %1298 = vmatprep.subr.mxu0 0.0
    %1299 = vmatpush1.msra.mxu0 0.0
    %1300 = vmatprep.subr.mxu0 0.0
    %1301 = vmatpush1.msra.mxu0 0.0
    %1302 = vmatprep.subr.mxu0 0.0
    %1303 = vmatpush1.msra.mxu0 0.0
    %1304 = vmatprep.subr.mxu0 0.0
    %1305 = vmatpush1.msra.mxu0 0.0
    %1306 = vmatprep.subr.mxu0 0.0
    %1307 = vmatpush1.msra.mxu0 0.0
    %1308 = vmatprep.subr.mxu0 0.0
    %1309 = vmatpush1.msra.mxu0 0.0
    %1310 = vmatprep.subr.mxu0 0.0
    %1311 = vmatpush1.msra.mxu0 0.0
    %1312 = vmatprep.subr.mxu0 0.0
    %1313 = vmatpush1.msra.mxu0 0.0
    %1314 = vmatprep.subr.mxu0 0.0
    %1315 = vmatpush1.msra.mxu0 0.0
    %1316 = vmatprep.subr.mxu0 0.0
    %1317 = vmatpush1.msra.mxu0 0.0
    %1318 = vmatprep.subr.mxu0 0.0
    %1319 = vmatpush1.msra.mxu0 0.0
    %1320 = vmatprep.subr.mxu0 0.0
    %1321 = vmatpush1.msra.mxu0 0.0
    %1322 = vmatprep.subr.mxu0 0.0
    %1323 = vmatpush1.msra.mxu0 0.0
    %1324 = vmatprep.subr.mxu0 0.0
    %1325 = vmatpush1.msra.mxu0 0.0
    %1326 = vmatprep.subr.mxu0 0.0
    %1327 = vmatpush1.msra.mxu0 0.0
    %1328 = vmatprep.subr.mxu0 0.0
    %1329 = vmatpush1.msra.mxu0 0.0
    %1330 = vmatprep.mubr.f32.mxu0 0.0
    %1331 = vmatmul.mubr.f32.gmra.mrb[0].mxu0 %v1255
    %v1332 = vpop.f32.mrb[0].mxu0
    %v1333 = vadd.f32 %v1253, %v1332
    %v1334 = vpop.f32.mrb[0].mxu0
    %1335 = vmatprep.mubr.f32.mxu0 0.0
    %1336 = vmatmul.mubr.f32.gmra.mrb[0].mxu0 %v1258
    %v1337 = vpop.f32.mrb[0].mxu0
    %v1338 = vadd.f32 %v1253, %v1337
    %v1339 = vpop.f32.mrb[0].mxu0
    %1340 = vmatprep.mubr.f32.mxu0 0.0
    %1341 = vmatmul.mubr.f32.gmra.mrb[0].mxu0 %v1261
    %v1342 = vpop.f32.mrb[0].mxu0
    %v1343 = vadd.f32 %v1253, %v1342
    %v1344 = vpop.f32.mrb[0].mxu0
    %1345 = vmatprep.mubr.f32.mxu0 0.0
    %1346 = vmatmul.mubr.f32.gmra.mrb[0].mxu0 %v1264
    %v1347 = vpop.f32.mrb[0].mxu0
    %v1348 = vadd.f32 %v1253, %v1347
    %v1349 = vpop.f32.mrb[0].mxu0
    %1350 = vdwg.mxu0
    %v1351 = vld [vmem:[%s2] sm:$0xff]
    %v1352 = vld [vmem:[%s2 + $0x8] sm:$0xff]
    %v1353 = vmul.f32 %v1242, %v216
    %v1354 = vmul.f32 %v1242, %v220
    %v1355 = vmul.f32 %v1242, %v224
    %v1356 = vmul.f32 %v1242, %v228
    %v1357 = vmul.f32 %v1242, %v232
    %v1358 = vmul.f32 %v1242, %v236
    %v1359 = vmul.f32 %v1242, %v240
    %v1360 = vmul.f32 %v1242, %v244
    %v1361 = vmul.f32 %v1247, %v216
    %v1362 = vmul.f32 %v1247, %v220
    %v1363 = vmul.f32 %v1247, %v224
    %v1364 = vmul.f32 %v1247, %v228
    %v1365 = vmul.f32 %v1247, %v232
    %v1366 = vmul.f32 %v1247, %v236
    %v1367 = vmul.f32 %v1247, %v240
    %v1368 = vmul.f32 %v1247, %v244
    %v1370 = vsel %vm78, %v1353, 0
    %v1373 = vsel %vm78, %v1354, 0
    %v1376 = vsel %vm78, %v1355, 0
    %v1379 = vsel %vm78, %v1356, 0
    %v1382 = vsel %vm78, %v1357, 0
    %v1385 = vsel %vm78, %v1358, 0
    %v1388 = vsel %vm78, %v1359, 0
    %v1391 = vsel %vm78, %v1360, 0
    %v1394 = vsel %vm78, %v1333, 0
    %v1397 = vsel %vm78, %v1338, 0
    %1399 = vmatprep.subr.mxu0 0.0
    %1400 = vmatpush1.xpose.msra.mxu0 %v1394
    %1401 = vmatprep.subr.mxu0 0.0
    %1402 = vmatpush1.xpose.msra.mxu0 %v1397
    %1403 = vmatprep.subr.mxu0 0.0
    %1404 = vmatpush1.xpose.msra.mxu0 0.0
    %1405 = vmatprep.subr.mxu0 0.0
    %1406 = vmatpush1.xpose.msra.mxu0 0.0
    %1407 = vmatprep.subr.mxu0 0.0
    %1408 = vmatpush1.xpose.msra.mxu0 0.0
    %1409 = vmatprep.subr.mxu0 0.0
    %1410 = vmatpush1.xpose.msra.mxu0 0.0
    %1411 = vmatprep.subr.mxu0 0.0
    %1412 = vmatpush1.xpose.msra.mxu0 0.0
    %1413 = vmatprep.subr.mxu0 0.0
    %1414 = vmatpush1.xpose.msra.mxu0 0.0
    %1415 = vmatprep.subr.mxu0 0.0
    %1416 = vmatpush1.xpose.msra.mxu0 0.0
    %1417 = vmatprep.subr.mxu0 0.0
    %1418 = vmatpush1.xpose.msra.mxu0 0.0
    %1419 = vmatprep.subr.mxu0 0.0
    %1420 = vmatpush1.xpose.msra.mxu0 0.0
    %1421 = vmatprep.subr.mxu0 0.0
    %1422 = vmatpush1.xpose.msra.mxu0 0.0
    %1423 = vmatprep.subr.mxu0 0.0
    %1424 = vmatpush1.xpose.msra.mxu0 0.0
    %1425 = vmatprep.subr.mxu0 0.0
    %1426 = vmatpush1.xpose.msra.mxu0 0.0
    %1427 = vmatprep.subr.mxu0 0.0
    %1428 = vmatpush1.xpose.msra.mxu0 0.0
    %1429 = vmatprep.subr.mxu0 0.0
    %1430 = vmatpush1.xpose.msra.mxu0 0.0
    %1431 = vmatprep.subr.mxu0 0.0
    %1432 = vmatpush1.xpose.msra.mxu0 0.0
    %1433 = vmatprep.subr.mxu0 0.0
    %1434 = vmatpush1.xpose.msra.mxu0 0.0
    %1435 = vmatprep.subr.mxu0 0.0
    %1436 = vmatpush1.xpose.msra.mxu0 0.0
    %1437 = vmatprep.subr.mxu0 0.0
    %1438 = vmatpush1.xpose.msra.mxu0 0.0
    %1439 = vmatprep.subr.mxu0 0.0
    %1440 = vmatpush1.xpose.msra.mxu0 0.0
    %1441 = vmatprep.subr.mxu0 0.0
    %1442 = vmatpush1.xpose.msra.mxu0 0.0
    %1443 = vmatprep.subr.mxu0 0.0
    %1444 = vmatpush1.xpose.msra.mxu0 0.0
    %1445 = vmatprep.subr.mxu0 0.0
    %1446 = vmatpush1.xpose.msra.mxu0 0.0
    %1447 = vmatprep.subr.mxu0 0.0
    %1448 = vmatpush1.xpose.msra.mxu0 0.0
    %1449 = vmatprep.subr.mxu0 0.0
    %1450 = vmatpush1.xpose.msra.mxu0 0.0
    %1451 = vmatprep.subr.mxu0 0.0
    %1452 = vmatpush1.xpose.msra.mxu0 0.0
    %1453 = vmatprep.subr.mxu0 0.0
    %1454 = vmatpush1.xpose.msra.mxu0 0.0
    %1455 = vmatprep.subr.mxu0 0.0
    %1456 = vmatpush1.xpose.msra.mxu0 0.0
    %1457 = vmatprep.subr.mxu0 0.0
    %1458 = vmatpush1.xpose.msra.mxu0 0.0
    %1459 = vmatprep.subr.mxu0 0.0
    %1460 = vmatpush1.xpose.msra.mxu0 0.0
    %1461 = vmatprep.subr.mxu0 0.0
    %1462 = vmatpush1.xpose.msra.mxu0 0.0
    %1463 = vmatprep.mubr.f32.mxu0 0.0
    %1464 = vmatmul.mubr.f32.gmra.mrb[0].mxu0 %v1370
    %v1465 = vpop.f32.mrb[0].mxu0
    %v1466 = vadd.f32 0.0, %v1465
    %v1467 = vpop.f32.mrb[0].mxu0
    %1468 = vmatprep.mubr.f32.mxu0 0.0
    %1469 = vmatmul.mubr.f32.gmra.mrb[0].mxu0 %v1373
    %v1470 = vpop.f32.mrb[0].mxu0
    %v1471 = vadd.f32 0.0, %v1470
    %v1472 = vpop.f32.mrb[0].mxu0
    %1473 = vmatprep.mubr.f32.mxu0 0.0
    %1474 = vmatmul.mubr.f32.gmra.mrb[0].mxu0 %v1376
    %v1475 = vpop.f32.mrb[0].mxu0
    %v1476 = vadd.f32 0.0, %v1475
    %v1477 = vpop.f32.mrb[0].mxu0
    %1478 = vmatprep.mubr.f32.mxu0 0.0
    %1479 = vmatmul.mubr.f32.gmra.mrb[0].mxu0 %v1379
    %v1480 = vpop.f32.mrb[0].mxu0
    %v1481 = vadd.f32 0.0, %v1480
    %v1482 = vpop.f32.mrb[0].mxu0
    %1483 = vmatprep.mubr.f32.mxu0 0.0
    %1484 = vmatmul.mubr.f32.gmra.mrb[0].mxu0 %v1382
    %v1485 = vpop.f32.mrb[0].mxu0
    %v1486 = vadd.f32 0.0, %v1485
    %v1487 = vpop.f32.mrb[0].mxu0
    %1488 = vmatprep.mubr.f32.mxu0 0.0
    %1489 = vmatmul.mubr.f32.gmra.mrb[0].mxu0 %v1385
    %v1490 = vpop.f32.mrb[0].mxu0
    %v1491 = vadd.f32 0.0, %v1490
    %v1492 = vpop.f32.mrb[0].mxu0
    %1493 = vmatprep.mubr.f32.mxu0 0.0
    %1494 = vmatmul.mubr.f32.gmra.mrb[0].mxu0 %v1388
    %v1495 = vpop.f32.mrb[0].mxu0
    %v1496 = vadd.f32 0.0, %v1495
    %v1497 = vpop.f32.mrb[0].mxu0
    %1498 = vmatprep.mubr.f32.mxu0 0.0
    %1499 = vmatmul.mubr.f32.gmra.mrb[0].mxu0 %v1391
    %v1500 = vpop.f32.mrb[0].mxu0
    %v1501 = vadd.f32 0.0, %v1500
    %v1502 = vpop.f32.mrb[0].mxu0
    %1503 = vdwg.mxu0
    %v1505 = vsel %vm78, %v1361, 0
    %v1508 = vsel %vm78, %v1362, 0
    %v1511 = vsel %vm78, %v1363, 0
    %v1514 = vsel %vm78, %v1364, 0
    %v1517 = vsel %vm78, %v1365, 0
    %v1520 = vsel %vm78, %v1366, 0
    %v1523 = vsel %vm78, %v1367, 0
    %v1526 = vsel %vm78, %v1368, 0
    %v1529 = vsel %vm78, %v1343, 0
    %v1532 = vsel %vm78, %v1348, 0
    %1534 = vmatprep.subr.mxu0 0.0
    %1535 = vmatpush1.xpose.msra.mxu0 %v1529
    %1536 = vmatprep.subr.mxu0 0.0
    %1537 = vmatpush1.xpose.msra.mxu0 %v1532
    %1538 = vmatprep.subr.mxu0 0.0
    %1539 = vmatpush1.xpose.msra.mxu0 0.0
    %1540 = vmatprep.subr.mxu0 0.0
    %1541 = vmatpush1.xpose.msra.mxu0 0.0
    %1542 = vmatprep.subr.mxu0 0.0
    %1543 = vmatpush1.xpose.msra.mxu0 0.0
    %1544 = vmatprep.subr.mxu0 0.0
    %1545 = vmatpush1.xpose.msra.mxu0 0.0
    %1546 = vmatprep.subr.mxu0 0.0
    %1547 = vmatpush1.xpose.msra.mxu0 0.0
    %1548 = vmatprep.subr.mxu0 0.0
    %1549 = vmatpush1.xpose.msra.mxu0 0.0
    %1550 = vmatprep.subr.mxu0 0.0
    %1551 = vmatpush1.xpose.msra.mxu0 0.0
    %1552 = vmatprep.subr.mxu0 0.0
    %1553 = vmatpush1.xpose.msra.mxu0 0.0
    %1554 = vmatprep.subr.mxu0 0.0
    %1555 = vmatpush1.xpose.msra.mxu0 0.0
    %1556 = vmatprep.subr.mxu0 0.0
    %1557 = vmatpush1.xpose.msra.mxu0 0.0
    %1558 = vmatprep.subr.mxu0 0.0
    %1559 = vmatpush1.xpose.msra.mxu0 0.0
    %1560 = vmatprep.subr.mxu0 0.0
    %1561 = vmatpush1.xpose.msra.mxu0 0.0
    %1562 = vmatprep.subr.mxu0 0.0
    %1563 = vmatpush1.xpose.msra.mxu0 0.0
    %1564 = vmatprep.subr.mxu0 0.0
    %1565 = vmatpush1.xpose.msra.mxu0 0.0
    %1566 = vmatprep.subr.mxu0 0.0
    %1567 = vmatpush1.xpose.msra.mxu0 0.0
    %1568 = vmatprep.subr.mxu0 0.0
    %1569 = vmatpush1.xpose.msra.mxu0 0.0
    %1570 = vmatprep.subr.mxu0 0.0
    %1571 = vmatpush1.xpose.msra.mxu0 0.0
    %1572 = vmatprep.subr.mxu0 0.0
    %1573 = vmatpush1.xpose.msra.mxu0 0.0
    %1574 = vmatprep.subr.mxu0 0.0
    %1575 = vmatpush1.xpose.msra.mxu0 0.0
    %1576 = vmatprep.subr.mxu0 0.0
    %1577 = vmatpush1.xpose.msra.mxu0 0.0
    %1578 = vmatprep.subr.mxu0 0.0
    %1579 = vmatpush1.xpose.msra.mxu0 0.0
    %1580 = vmatprep.subr.mxu0 0.0
    %1581 = vmatpush1.xpose.msra.mxu0 0.0
    %1582 = vmatprep.subr.mxu0 0.0
    %1583 = vmatpush1.xpose.msra.mxu0 0.0
    %1584 = vmatprep.subr.mxu0 0.0
    %1585 = vmatpush1.xpose.msra.mxu0 0.0
    %1586 = vmatprep.subr.mxu0 0.0
    %1587 = vmatpush1.xpose.msra.mxu0 0.0
    %1588 = vmatprep.subr.mxu0 0.0
    %1589 = vmatpush1.xpose.msra.mxu0 0.0
    %1590 = vmatprep.subr.mxu0 0.0
    %1591 = vmatpush1.xpose.msra.mxu0 0.0
    %1592 = vmatprep.subr.mxu0 0.0
    %1593 = vmatpush1.xpose.msra.mxu0 0.0
    %1594 = vmatprep.subr.mxu0 0.0
    %1595 = vmatpush1.xpose.msra.mxu0 0.0
    %1596 = vmatprep.subr.mxu0 0.0
    %1597 = vmatpush1.xpose.msra.mxu0 0.0
    %1598 = vmatprep.mubr.f32.mxu0 0.0
    %1599 = vmatmul.mubr.f32.gmra.mrb[0].mxu0 %v1505
    %v1600 = vpop.f32.mrb[0].mxu0
    %v1601 = vadd.f32 0.0, %v1600
    %v1602 = vpop.f32.mrb[0].mxu0
    %1603 = vmatprep.mubr.f32.mxu0 0.0
    %1604 = vmatmul.mubr.f32.gmra.mrb[0].mxu0 %v1508
    %v1605 = vpop.f32.mrb[0].mxu0
    %v1606 = vadd.f32 0.0, %v1605
    %v1607 = vpop.f32.mrb[0].mxu0
    %1608 = vmatprep.mubr.f32.mxu0 0.0
    %1609 = vmatmul.mubr.f32.gmra.mrb[0].mxu0 %v1511
    %v1610 = vpop.f32.mrb[0].mxu0
    %v1611 = vadd.f32 0.0, %v1610
    %v1612 = vpop.f32.mrb[0].mxu0
    %1613 = vmatprep.mubr.f32.mxu0 0.0
    %1614 = vmatmul.mubr.f32.gmra.mrb[0].mxu0 %v1514
    %v1615 = vpop.f32.mrb[0].mxu0
    %v1616 = vadd.f32 0.0, %v1615
    %v1617 = vpop.f32.mrb[0].mxu0
    %1618 = vmatprep.mubr.f32.mxu0 0.0
    %1619 = vmatmul.mubr.f32.gmra.mrb[0].mxu0 %v1517
    %v1620 = vpop.f32.mrb[0].mxu0
    %v1621 = vadd.f32 0.0, %v1620
    %v1622 = vpop.f32.mrb[0].mxu0
    %1623 = vmatprep.mubr.f32.mxu0 0.0
    %1624 = vmatmul.mubr.f32.gmra.mrb[0].mxu0 %v1520
    %v1625 = vpop.f32.mrb[0].mxu0
    %v1626 = vadd.f32 0.0, %v1625
    %v1627 = vpop.f32.mrb[0].mxu0
    %1628 = vmatprep.mubr.f32.mxu0 0.0
    %1629 = vmatmul.mubr.f32.gmra.mrb[0].mxu0 %v1523
    %v1630 = vpop.f32.mrb[0].mxu0
    %v1631 = vadd.f32 0.0, %v1630
    %v1632 = vpop.f32.mrb[0].mxu0
    %1633 = vmatprep.mubr.f32.mxu0 0.0
    %1634 = vmatmul.mubr.f32.gmra.mrb[0].mxu0 %v1526
    %v1635 = vpop.f32.mrb[0].mxu0
    %v1636 = vadd.f32 0.0, %v1635
    %v1637 = vpop.f32.mrb[0].mxu0
    %1638 = vdwg.mxu0
    %v1639 = vadd.f32 %v1466, %v1351
    %v1640 = vadd.f32 %v1471, %v1351
    %v1641 = vadd.f32 %v1476, %v1351
    %v1642 = vadd.f32 %v1481, %v1351
    %v1643 = vadd.f32 %v1486, %v1351
    %v1644 = vadd.f32 %v1491, %v1351
    %v1645 = vadd.f32 %v1496, %v1351
    %v1646 = vadd.f32 %v1501, %v1351
    %v1647 = vadd.f32 %v1601, %v1352
    %v1648 = vadd.f32 %v1606, %v1352
    %v1649 = vadd.f32 %v1611, %v1352
    %v1650 = vadd.f32 %v1616, %v1352
    %v1651 = vadd.f32 %v1621, %v1352
    %v1652 = vadd.f32 %v1626, %v1352
    %v1653 = vadd.f32 %v1631, %v1352
    %v1654 = vadd.f32 %v1636, %v1352
    %vm1655 = vcmask 130048
    %v1656 = vsel %vm1655, %v1639, -inf
    %1657 = vmax.xlane.f32.xlu0 %v1656
    %v1658 = vpop.xlane.xlu0 %1657
    %v1659 = vsel %vm1655, %v1640, -inf
    %1660 = vmax.xlane.f32.xlu0 %v1659
    %v1661 = vpop.xlane.xlu0 %1660
    %v1662 = vsel %vm1655, %v1641, -inf
    %1663 = vmax.xlane.f32.xlu0 %v1662
    %v1664 = vpop.xlane.xlu0 %1663
    %v1665 = vsel %vm1655, %v1642, -inf
    %1666 = vmax.xlane.f32.xlu0 %v1665
    %v1667 = vpop.xlane.xlu0 %1666
    %v1668 = vsel %vm1655, %v1643, -inf
    %1669 = vmax.xlane.f32.xlu0 %v1668
    %v1670 = vpop.xlane.xlu0 %1669
    %v1671 = vsel %vm1655, %v1644, -inf
    %1672 = vmax.xlane.f32.xlu0 %v1671
    %v1673 = vpop.xlane.xlu0 %1672
    %v1674 = vsel %vm1655, %v1645, -inf
    %1675 = vmax.xlane.f32.xlu0 %v1674
    %v1676 = vpop.xlane.xlu0 %1675
    %v1677 = vsel %vm1655, %v1646, -inf
    %1678 = vmax.xlane.f32.xlu0 %v1677
    %v1679 = vpop.xlane.xlu0 %1678
    %v1680 = vsel %vm1655, %v1647, -inf
    %1681 = vmax.xlane.f32.xlu0 %v1680
    %v1682 = vpop.xlane.xlu0 %1681
    %v1683 = vsel %vm1655, %v1648, -inf
    %1684 = vmax.xlane.f32.xlu0 %v1683
    %v1685 = vpop.xlane.xlu0 %1684
    %v1686 = vsel %vm1655, %v1649, -inf
    %1687 = vmax.xlane.f32.xlu0 %v1686
    %v1688 = vpop.xlane.xlu0 %1687
    %v1689 = vsel %vm1655, %v1650, -inf
    %1690 = vmax.xlane.f32.xlu0 %v1689
    %v1691 = vpop.xlane.xlu0 %1690
    %v1692 = vsel %vm1655, %v1651, -inf
    %1693 = vmax.xlane.f32.xlu0 %v1692
    %v1694 = vpop.xlane.xlu0 %1693
    %v1695 = vsel %vm1655, %v1652, -inf
    %1696 = vmax.xlane.f32.xlu0 %v1695
    %v1697 = vpop.xlane.xlu0 %1696
    %v1698 = vsel %vm1655, %v1653, -inf
    %1699 = vmax.xlane.f32.xlu0 %v1698
    %v1700 = vpop.xlane.xlu0 %1699
    %v1701 = vsel %vm1655, %v1654, -inf
    %1702 = vmax.xlane.f32.xlu0 %v1701
    %v1703 = vpop.xlane.xlu0 %1702
    %v1704 = vsub.f32 %v1639, %v1658
    %v1705 = vsub.f32 %v1640, %v1661
    %v1706 = vsub.f32 %v1641, %v1664
    %v1707 = vsub.f32 %v1642, %v1667
    %v1708 = vsub.f32 %v1643, %v1670
    %v1709 = vsub.f32 %v1644, %v1673
    %v1710 = vsub.f32 %v1645, %v1676
    %v1711 = vsub.f32 %v1646, %v1679
    %v1712 = vsub.f32 %v1647, %v1682
    %v1713 = vsub.f32 %v1648, %v1685
    %v1714 = vsub.f32 %v1649, %v1688
    %v1715 = vsub.f32 %v1650, %v1691
    %v1716 = vsub.f32 %v1651, %v1694
    %v1717 = vsub.f32 %v1652, %v1697
    %v1718 = vsub.f32 %v1653, %v1700
    %v1719 = vsub.f32 %v1654, %v1703
    %v1720 = vmul.f32 %v1704, 1.442695
    %v1721 = vpow.pop %v1720
    %v1722 = vmul.f32 %v1705, 1.442695
    %v1723 = vpow.pop %v1722
    %v1724 = vmul.f32 %v1706, 1.442695
    %v1725 = vpow.pop %v1724
    %v1726 = vmul.f32 %v1707, 1.442695
    %v1727 = vpow.pop %v1726
    %v1728 = vmul.f32 %v1708, 1.442695
    %v1729 = vpow.pop %v1728
    %v1730 = vmul.f32 %v1709, 1.442695
    %v1731 = vpow.pop %v1730
    %v1732 = vmul.f32 %v1710, 1.442695
    %v1733 = vpow.pop %v1732
    %v1734 = vmul.f32 %v1711, 1.442695
    %v1735 = vpow.pop %v1734
    %v1736 = vmul.f32 %v1712, 1.442695
    %v1737 = vpow.pop %v1736
    %v1738 = vmul.f32 %v1713, 1.442695
    %v1739 = vpow.pop %v1738
    %v1740 = vmul.f32 %v1714, 1.442695
    %v1741 = vpow.pop %v1740
    %v1742 = vmul.f32 %v1715, 1.442695
    %v1743 = vpow.pop %v1742
    %v1744 = vmul.f32 %v1716, 1.442695
    %v1745 = vpow.pop %v1744
    %v1746 = vmul.f32 %v1717, 1.442695
    %v1747 = vpow.pop %v1746
    %v1748 = vmul.f32 %v1718, 1.442695
    %v1749 = vpow.pop %v1748
    %v1750 = vmul.f32 %v1719, 1.442695
    %v1751 = vpow.pop %v1750
    %v1752 = vsel %vm1655, %v1721, 0.0
    %1753 = vadd.xlane.f32.xlu0 %v1752
    %v1754 = vpop.xlane.xlu0 %1753
    %v1755 = vsel %vm1655, %v1723, 0.0
    %1756 = vadd.xlane.f32.xlu0 %v1755
    %v1757 = vpop.xlane.xlu0 %1756
    %v1758 = vsel %vm1655, %v1725, 0.0
    %1759 = vadd.xlane.f32.xlu0 %v1758
    %v1760 = vpop.xlane.xlu0 %1759
    %v1761 = vsel %vm1655, %v1727, 0.0
    %1762 = vadd.xlane.f32.xlu0 %v1761
    %v1763 = vpop.xlane.xlu0 %1762
    %v1764 = vsel %vm1655, %v1729, 0.0
    %1765 = vadd.xlane.f32.xlu0 %v1764
    %v1766 = vpop.xlane.xlu0 %1765
    %v1767 = vsel %vm1655, %v1731, 0.0
    %1768 = vadd.xlane.f32.xlu0 %v1767
    %v1769 = vpop.xlane.xlu0 %1768
    %v1770 = vsel %vm1655, %v1733, 0.0
    %1771 = vadd.xlane.f32.xlu0 %v1770
    %v1772 = vpop.xlane.xlu0 %1771
    %v1773 = vsel %vm1655, %v1735, 0.0
    %1774 = vadd.xlane.f32.xlu0 %v1773
    %v1775 = vpop.xlane.xlu0 %1774
    %v1776 = vsel %vm1655, %v1737, 0.0
    %1777 = vadd.xlane.f32.xlu0 %v1776
    %v1778 = vpop.xlane.xlu0 %1777
    %v1779 = vsel %vm1655, %v1739, 0.0
    %1780 = vadd.xlane.f32.xlu0 %v1779
    %v1781 = vpop.xlane.xlu0 %1780
    %v1782 = vsel %vm1655, %v1741, 0.0
    %1783 = vadd.xlane.f32.xlu0 %v1782
    %v1784 = vpop.xlane.xlu0 %1783
    %v1785 = vsel %vm1655, %v1743, 0.0
    %1786 = vadd.xlane.f32.xlu0 %v1785
    %v1787 = vpop.xlane.xlu0 %1786
    %v1788 = vsel %vm1655, %v1745, 0.0
    %1789 = vadd.xlane.f32.xlu0 %v1788
    %v1790 = vpop.xlane.xlu0 %1789
    %v1791 = vsel %vm1655, %v1747, 0.0
    %1792 = vadd.xlane.f32.xlu0 %v1791
    %v1793 = vpop.xlane.xlu0 %1792
    %v1794 = vsel %vm1655, %v1749, 0.0
    %1795 = vadd.xlane.f32.xlu0 %v1794
    %v1796 = vpop.xlane.xlu0 %1795
    %v1797 = vsel %vm1655, %v1751, 0.0
    %1798 = vadd.xlane.f32.xlu0 %v1797
    %v1799 = vpop.xlane.xlu0 %1798
    %v1800 = vrcp.pop %v1754
    %v1801 = vmul.f32 %v1721, %v1800
    %v1802 = vrcp.pop %v1757
    %v1803 = vmul.f32 %v1723, %v1802
    %v1804 = vrcp.pop %v1760
    %v1805 = vmul.f32 %v1725, %v1804
    %v1806 = vrcp.pop %v1763
    %v1807 = vmul.f32 %v1727, %v1806
    %v1808 = vrcp.pop %v1766
    %v1809 = vmul.f32 %v1729, %v1808
    %v1810 = vrcp.pop %v1769
    %v1811 = vmul.f32 %v1731, %v1810
    %v1812 = vrcp.pop %v1772
    %v1813 = vmul.f32 %v1733, %v1812
    %v1814 = vrcp.pop %v1775
    %v1815 = vmul.f32 %v1735, %v1814
    %v1816 = vrcp.pop %v1778
    %v1817 = vmul.f32 %v1737, %v1816
    %v1818 = vrcp.pop %v1781
    %v1819 = vmul.f32 %v1739, %v1818
    %v1820 = vrcp.pop %v1784
    %v1821 = vmul.f32 %v1741, %v1820
    %v1822 = vrcp.pop %v1787
    %v1823 = vmul.f32 %v1743, %v1822
    %v1824 = vrcp.pop %v1790
    %v1825 = vmul.f32 %v1745, %v1824
    %v1826 = vrcp.pop %v1793
    %v1827 = vmul.f32 %v1747, %v1826
    %v1828 = vrcp.pop %v1796
    %v1829 = vmul.f32 %v1749, %v1828
    %v1830 = vrcp.pop %v1799
    %v1831 = vmul.f32 %v1751, %v1830
    %1832 = vrot.lane.b32.xlu0 %v1333, 96
    %v1833 = vpop.permute.xlu0 %1832
    %1834 = vrot.lane.b32.xlu0 %v1338, 96
    %v1835 = vpop.permute.xlu0 %1834
    %v1839 = vsel %vm1655, %v1801, 0
    %v1842 = vsel %vm1655, %v1803, 0
    %v1845 = vsel %vm1655, %v1805, 0
    %v1848 = vsel %vm1655, %v1807, 0
    %v1851 = vsel %vm1655, %v1809, 0
    %v1854 = vsel %vm1655, %v1811, 0
    %v1857 = vsel %vm1655, %v1813, 0
    %v1860 = vsel %vm1655, %v1815, 0
    %1862 = vmatprep.subr.mxu0 0.0
    %1863 = vmatpush1.msra.mxu0 %v1833
    %1864 = vmatprep.subr.mxu0 0.0
    %1865 = vmatpush1.msra.mxu0 %v1835
    %1866 = vmatprep.subr.mxu0 0.0
    %1867 = vmatpush1.msra.mxu0 0.0
    %1868 = vmatprep.subr.mxu0 0.0
    %1869 = vmatpush1.msra.mxu0 0.0
    %1870 = vmatprep.subr.mxu0 0.0
    %1871 = vmatpush1.msra.mxu0 0.0
    %1872 = vmatprep.subr.mxu0 0.0
    %1873 = vmatpush1.msra.mxu0 0.0
    %1874 = vmatprep.subr.mxu0 0.0
    %1875 = vmatpush1.msra.mxu0 0.0
    %1876 = vmatprep.subr.mxu0 0.0
    %1877 = vmatpush1.msra.mxu0 0.0
    %1878 = vmatprep.subr.mxu0 0.0
    %1879 = vmatpush1.msra.mxu0 0.0
    %1880 = vmatprep.subr.mxu0 0.0
    %1881 = vmatpush1.msra.mxu0 0.0
    %1882 = vmatprep.subr.mxu0 0.0
    %1883 = vmatpush1.msra.mxu0 0.0
    %1884 = vmatprep.subr.mxu0 0.0
    %1885 = vmatpush1.msra.mxu0 0.0
    %1886 = vmatprep.subr.mxu0 0.0
    %1887 = vmatpush1.msra.mxu0 0.0
    %1888 = vmatprep.subr.mxu0 0.0
    %1889 = vmatpush1.msra.mxu0 0.0
    %1890 = vmatprep.subr.mxu0 0.0
    %1891 = vmatpush1.msra.mxu0 0.0
    %1892 = vmatprep.subr.mxu0 0.0
    %1893 = vmatpush1.msra.mxu0 0.0
    %1894 = vmatprep.subr.mxu0 0.0
    %1895 = vmatpush1.msra.mxu0 0.0
    %1896 = vmatprep.subr.mxu0 0.0
    %1897 = vmatpush1.msra.mxu0 0.0
    %1898 = vmatprep.subr.mxu0 0.0
    %1899 = vmatpush1.msra.mxu0 0.0
    %1900 = vmatprep.subr.mxu0 0.0
    %1901 = vmatpush1.msra.mxu0 0.0
    %1902 = vmatprep.subr.mxu0 0.0
    %1903 = vmatpush1.msra.mxu0 0.0
    %1904 = vmatprep.subr.mxu0 0.0
    %1905 = vmatpush1.msra.mxu0 0.0
    %1906 = vmatprep.subr.mxu0 0.0
    %1907 = vmatpush1.msra.mxu0 0.0
    %1908 = vmatprep.subr.mxu0 0.0
    %1909 = vmatpush1.msra.mxu0 0.0
    %1910 = vmatprep.subr.mxu0 0.0
    %1911 = vmatpush1.msra.mxu0 0.0
    %1912 = vmatprep.subr.mxu0 0.0
    %1913 = vmatpush1.msra.mxu0 0.0
    %1914 = vmatprep.subr.mxu0 0.0
    %1915 = vmatpush1.msra.mxu0 0.0
    %1916 = vmatprep.subr.mxu0 0.0
    %1917 = vmatpush1.msra.mxu0 0.0
    %1918 = vmatprep.subr.mxu0 0.0
    %1919 = vmatpush1.msra.mxu0 0.0
    %1920 = vmatprep.subr.mxu0 0.0
    %1921 = vmatpush1.msra.mxu0 0.0
    %1922 = vmatprep.subr.mxu0 0.0
    %1923 = vmatpush1.msra.mxu0 0.0
    %1924 = vmatprep.subr.mxu0 0.0
    %1925 = vmatpush1.msra.mxu0 0.0
    %1926 = vmatprep.mubr.f32.mxu0 0.0
    %1927 = vmatmul.mubr.f32.gmra.mrb[0].mxu0 %v1839
    %v1928 = vpop.f32.mrb[0].mxu0
    %v1929 = vadd.f32 0.0, %v1928
    %v1930 = vpop.f32.mrb[0].mxu0
    %1931 = vmatprep.mubr.f32.mxu0 0.0
    %1932 = vmatmul.mubr.f32.gmra.mrb[0].mxu0 %v1842
    %v1933 = vpop.f32.mrb[0].mxu0
    %v1934 = vadd.f32 0.0, %v1933
    %v1935 = vpop.f32.mrb[0].mxu0
    %1936 = vmatprep.mubr.f32.mxu0 0.0
    %1937 = vmatmul.mubr.f32.gmra.mrb[0].mxu0 %v1845
    %v1938 = vpop.f32.mrb[0].mxu0
    %v1939 = vadd.f32 0.0, %v1938
    %v1940 = vpop.f32.mrb[0].mxu0
    %1941 = vmatprep.mubr.f32.mxu0 0.0
    %1942 = vmatmul.mubr.f32.gmra.mrb[0].mxu0 %v1848
    %v1943 = vpop.f32.mrb[0].mxu0
    %v1944 = vadd.f32 0.0, %v1943
    %v1945 = vpop.f32.mrb[0].mxu0
    %1946 = vmatprep.mubr.f32.mxu0 0.0
    %1947 = vmatmul.mubr.f32.gmra.mrb[0].mxu0 %v1851
    %v1948 = vpop.f32.mrb[0].mxu0
    %v1949 = vadd.f32 0.0, %v1948
    %v1950 = vpop.f32.mrb[0].mxu0
    %1951 = vmatprep.mubr.f32.mxu0 0.0
    %1952 = vmatmul.mubr.f32.gmra.mrb[0].mxu0 %v1854
    %v1953 = vpop.f32.mrb[0].mxu0
    %v1954 = vadd.f32 0.0, %v1953
    %v1955 = vpop.f32.mrb[0].mxu0
    %1956 = vmatprep.mubr.f32.mxu0 0.0
    %1957 = vmatmul.mubr.f32.gmra.mrb[0].mxu0 %v1857
    %v1958 = vpop.f32.mrb[0].mxu0
    %v1959 = vadd.f32 0.0, %v1958
    %v1960 = vpop.f32.mrb[0].mxu0
    %1961 = vmatprep.mubr.f32.mxu0 0.0
    %1962 = vmatmul.mubr.f32.gmra.mrb[0].mxu0 %v1860
    %v1963 = vpop.f32.mrb[0].mxu0
    %v1964 = vadd.f32 0.0, %v1963
    %v1965 = vpop.f32.mrb[0].mxu0
    %1966 = vdwg.mxu0
    %1967 = vrot.lane.b32.xlu0 %v1343, 96
    %v1968 = vpop.permute.xlu0 %1967
    %1969 = vrot.lane.b32.xlu0 %v1348, 96
    %v1970 = vpop.permute.xlu0 %1969
    %v1974 = vsel %vm1655, %v1817, 0
    %v1977 = vsel %vm1655, %v1819, 0
    %v1980 = vsel %vm1655, %v1821, 0
    %v1983 = vsel %vm1655, %v1823, 0
    %v1986 = vsel %vm1655, %v1825, 0
    %v1989 = vsel %vm1655, %v1827, 0
    %v1992 = vsel %vm1655, %v1829, 0
    %v1995 = vsel %vm1655, %v1831, 0
    %1997 = vmatprep.subr.mxu0 0.0
    %1998 = vmatpush1.msra.mxu0 %v1968
    %1999 = vmatprep.subr.mxu0 0.0
    %2000 = vmatpush1.msra.mxu0 %v1970
    %2001 = vmatprep.subr.mxu0 0.0
    %2002 = vmatpush1.msra.mxu0 0.0
    %2003 = vmatprep.subr.mxu0 0.0
    %2004 = vmatpush1.msra.mxu0 0.0
    %2005 = vmatprep.subr.mxu0 0.0
    %2006 = vmatpush1.msra.mxu0 0.0
    %2007 = vmatprep.subr.mxu0 0.0
    %2008 = vmatpush1.msra.mxu0 0.0
    %2009 = vmatprep.subr.mxu0 0.0
    %2010 = vmatpush1.msra.mxu0 0.0
    %2011 = vmatprep.subr.mxu0 0.0
    %2012 = vmatpush1.msra.mxu0 0.0
    %2013 = vmatprep.subr.mxu0 0.0
    %2014 = vmatpush1.msra.mxu0 0.0
    %2015 = vmatprep.subr.mxu0 0.0
    %2016 = vmatpush1.msra.mxu0 0.0
    %2017 = vmatprep.subr.mxu0 0.0
    %2018 = vmatpush1.msra.mxu0 0.0
    %2019 = vmatprep.subr.mxu0 0.0
    %2020 = vmatpush1.msra.mxu0 0.0
    %2021 = vmatprep.subr.mxu0 0.0
    %2022 = vmatpush1.msra.mxu0 0.0
    %2023 = vmatprep.subr.mxu0 0.0
    %2024 = vmatpush1.msra.mxu0 0.0
    %2025 = vmatprep.subr.mxu0 0.0
    %2026 = vmatpush1.msra.mxu0 0.0
    %2027 = vmatprep.subr.mxu0 0.0
    %2028 = vmatpush1.msra.mxu0 0.0
    %2029 = vmatprep.subr.mxu0 0.0
    %2030 = vmatpush1.msra.mxu0 0.0
    %2031 = vmatprep.subr.mxu0 0.0
    %2032 = vmatpush1.msra.mxu0 0.0
    %2033 = vmatprep.subr.mxu0 0.0
    %2034 = vmatpush1.msra.mxu0 0.0
    %2035 = vmatprep.subr.mxu0 0.0
    %2036 = vmatpush1.msra.mxu0 0.0
    %2037 = vmatprep.subr.mxu0 0.0
    %2038 = vmatpush1.msra.mxu0 0.0
    %2039 = vmatprep.subr.mxu0 0.0
    %2040 = vmatpush1.msra.mxu0 0.0
    %2041 = vmatprep.subr.mxu0 0.0
    %2042 = vmatpush1.msra.mxu0 0.0
    %2043 = vmatprep.subr.mxu0 0.0
    %2044 = vmatpush1.msra.mxu0 0.0
    %2045 = vmatprep.subr.mxu0 0.0
    %2046 = vmatpush1.msra.mxu0 0.0
    %2047 = vmatprep.subr.mxu0 0.0
    %2048 = vmatpush1.msra.mxu0 0.0
    %2049 = vmatprep.subr.mxu0 0.0
    %2050 = vmatpush1.msra.mxu0 0.0
    %2051 = vmatprep.subr.mxu0 0.0
    %2052 = vmatpush1.msra.mxu0 0.0
    %2053 = vmatprep.subr.mxu0 0.0
    %2054 = vmatpush1.msra.mxu0 0.0
    %2055 = vmatprep.subr.mxu0 0.0
    %2056 = vmatpush1.msra.mxu0 0.0
    %2057 = vmatprep.subr.mxu0 0.0
    %2058 = vmatpush1.msra.mxu0 0.0
    %2059 = vmatprep.subr.mxu0 0.0
    %2060 = vmatpush1.msra.mxu0 0.0
    %2061 = vmatprep.mubr.f32.mxu0 0.0
    %2062 = vmatmul.mubr.f32.gmra.mrb[0].mxu0 %v1974
    %v2063 = vpop.f32.mrb[0].mxu0
    %v2064 = vadd.f32 0.0, %v2063
    %v2065 = vpop.f32.mrb[0].mxu0
    %2066 = vmatprep.mubr.f32.mxu0 0.0
    %2067 = vmatmul.mubr.f32.gmra.mrb[0].mxu0 %v1977
    %v2068 = vpop.f32.mrb[0].mxu0
    %v2069 = vadd.f32 0.0, %v2068
    %v2070 = vpop.f32.mrb[0].mxu0
    %2071 = vmatprep.mubr.f32.mxu0 0.0
    %2072 = vmatmul.mubr.f32.gmra.mrb[0].mxu0 %v1980
    %v2073 = vpop.f32.mrb[0].mxu0
    %v2074 = vadd.f32 0.0, %v2073
    %v2075 = vpop.f32.mrb[0].mxu0
    %2076 = vmatprep.mubr.f32.mxu0 0.0
    %2077 = vmatmul.mubr.f32.gmra.mrb[0].mxu0 %v1983
    %v2078 = vpop.f32.mrb[0].mxu0
    %v2079 = vadd.f32 0.0, %v2078
    %v2080 = vpop.f32.mrb[0].mxu0
    %2081 = vmatprep.mubr.f32.mxu0 0.0
    %2082 = vmatmul.mubr.f32.gmra.mrb[0].mxu0 %v1986
    %v2083 = vpop.f32.mrb[0].mxu0
    %v2084 = vadd.f32 0.0, %v2083
    %v2085 = vpop.f32.mrb[0].mxu0
    %2086 = vmatprep.mubr.f32.mxu0 0.0
    %2087 = vmatmul.mubr.f32.gmra.mrb[0].mxu0 %v1989
    %v2088 = vpop.f32.mrb[0].mxu0
    %v2089 = vadd.f32 0.0, %v2088
    %v2090 = vpop.f32.mrb[0].mxu0
    %2091 = vmatprep.mubr.f32.mxu0 0.0
    %2092 = vmatmul.mubr.f32.gmra.mrb[0].mxu0 %v1992
    %v2093 = vpop.f32.mrb[0].mxu0
    %v2094 = vadd.f32 0.0, %v2093
    %v2095 = vpop.f32.mrb[0].mxu0
    %2096 = vmatprep.mubr.f32.mxu0 0.0
    %2097 = vmatmul.mubr.f32.gmra.mrb[0].mxu0 %v1995
    %v2098 = vpop.f32.mrb[0].mxu0
    %v2099 = vadd.f32 0.0, %v2098
    %v2100 = vpop.f32.mrb[0].mxu0
    %2101 = vdwg.mxu0
    %v2102 = vmul.f32 %v1929, %v216
    %v2103 = vmul.f32 %v1934, %v220
    %v2104 = vmul.f32 %v1939, %v224
    %v2105 = vmul.f32 %v1944, %v228
    %v2106 = vmul.f32 %v1949, %v232
    %v2107 = vmul.f32 %v1954, %v236
    %v2108 = vmul.f32 %v1959, %v240
    %v2109 = vmul.f32 %v1964, %v244
    %v2110 = vmul.f32 %v2064, %v216
    %v2111 = vmul.f32 %v2069, %v220
    %v2112 = vmul.f32 %v2074, %v224
    %v2113 = vmul.f32 %v2079, %v228
    %v2114 = vmul.f32 %v2084, %v232
    %v2115 = vmul.f32 %v2089, %v236
    %v2116 = vmul.f32 %v2094, %v240
    %v2117 = vmul.f32 %v2099, %v244
    %v2118 = vsel %vm78, %v2102, 0.0
    %v2119 = vsel %vm78, %v2103, 0.0
    %v2120 = vadd.f32 %v2118, %v2119
    %v2121 = vsel %vm78, %v2104, 0.0
    %v2122 = vadd.f32 %v2120, %v2121
    %v2123 = vsel %vm78, %v2105, 0.0
    %v2124 = vadd.f32 %v2122, %v2123
    %v2125 = vsel %vm78, %v2106, 0.0
    %v2126 = vadd.f32 %v2124, %v2125
    %v2127 = vsel %vm78, %v2107, 0.0
    %v2128 = vadd.f32 %v2126, %v2127
    %v2129 = vsel %vm78, %v2108, 0.0
    %v2130 = vadd.f32 %v2128, %v2129
    %v2131 = vsel %vm78, %v2109, 0.0
    %v2132 = vadd.f32 %v2130, %v2131
    %v2133 = vsel %vm78, %v2110, 0.0
    %v2134 = vsel %vm78, %v2111, 0.0
    %v2135 = vadd.f32 %v2133, %v2134
    %v2136 = vsel %vm78, %v2112, 0.0
    %v2137 = vadd.f32 %v2135, %v2136
    %v2138 = vsel %vm78, %v2113, 0.0
    %v2139 = vadd.f32 %v2137, %v2138
    %v2140 = vsel %vm78, %v2114, 0.0
    %v2141 = vadd.f32 %v2139, %v2140
    %v2142 = vsel %vm78, %v2115, 0.0
    %v2143 = vadd.f32 %v2141, %v2142
    %v2144 = vsel %vm78, %v2116, 0.0
    %v2145 = vadd.f32 %v2143, %v2144
    %v2146 = vsel %vm78, %v2117, 0.0
    %v2147 = vadd.f32 %v2145, %v2146
    %v2148 = vlaneseq
    %v2149 = vshrl.u32 %v2148, 7
    %v2150 = vsub.s32 2, %v2149
    %v2151 = vrot.slane %v76, %v2150
    %v2153 = vsel %vm78, %v2132, 0
    %v2156 = vsel %vm78, %v2147, 0
    %2158 = vmatprep.subr.mxu0 0.0
    %2159 = vmatpush1.msra.mxu0 %v64
    %2160 = vmatprep.subr.mxu0 0.0
    %2161 = vmatpush1.msra.mxu0 %v65
    %2162 = vmatprep.subr.mxu0 0.0
    %2163 = vmatpush1.msra.mxu0 %v66
    %2164 = vmatprep.subr.mxu0 0.0
    %2165 = vmatpush1.msra.mxu0 %v67
    %2166 = vmatprep.subr.mxu0 0.0
    %2167 = vmatpush1.msra.mxu0 0.0
    %2168 = vmatprep.subr.mxu0 0.0
    %2169 = vmatpush1.msra.mxu0 0.0
    %2170 = vmatprep.subr.mxu0 0.0
    %2171 = vmatpush1.msra.mxu0 0.0
    %2172 = vmatprep.subr.mxu0 0.0
    %2173 = vmatpush1.msra.mxu0 0.0
    %2174 = vmatprep.subr.mxu0 0.0
    %2175 = vmatpush1.msra.mxu0 0.0
    %2176 = vmatprep.subr.mxu0 0.0
    %2177 = vmatpush1.msra.mxu0 0.0
    %2178 = vmatprep.subr.mxu0 0.0
    %2179 = vmatpush1.msra.mxu0 0.0
    %2180 = vmatprep.subr.mxu0 0.0
    %2181 = vmatpush1.msra.mxu0 0.0
    %2182 = vmatprep.subr.mxu0 0.0
    %2183 = vmatpush1.msra.mxu0 0.0
    %2184 = vmatprep.subr.mxu0 0.0
    %2185 = vmatpush1.msra.mxu0 0.0
    %2186 = vmatprep.subr.mxu0 0.0
    %2187 = vmatpush1.msra.mxu0 0.0
    %2188 = vmatprep.subr.mxu0 0.0
    %2189 = vmatpush1.msra.mxu0 0.0
    %2190 = vmatprep.subr.mxu0 0.0
    %2191 = vmatpush1.msra.mxu0 0.0
    %2192 = vmatprep.subr.mxu0 0.0
    %2193 = vmatpush1.msra.mxu0 0.0
    %2194 = vmatprep.subr.mxu0 0.0
    %2195 = vmatpush1.msra.mxu0 0.0
    %2196 = vmatprep.subr.mxu0 0.0
    %2197 = vmatpush1.msra.mxu0 0.0
    %2198 = vmatprep.subr.mxu0 0.0
    %2199 = vmatpush1.msra.mxu0 0.0
    %2200 = vmatprep.subr.mxu0 0.0
    %2201 = vmatpush1.msra.mxu0 0.0
    %2202 = vmatprep.subr.mxu0 0.0
    %2203 = vmatpush1.msra.mxu0 0.0
    %2204 = vmatprep.subr.mxu0 0.0
    %2205 = vmatpush1.msra.mxu0 0.0
    %2206 = vmatprep.subr.mxu0 0.0
    %2207 = vmatpush1.msra.mxu0 0.0
    %2208 = vmatprep.subr.mxu0 0.0
    %2209 = vmatpush1.msra.mxu0 0.0
    %2210 = vmatprep.subr.mxu0 0.0
    %2211 = vmatpush1.msra.mxu0 0.0
    %2212 = vmatprep.subr.mxu0 0.0
    %2213 = vmatpush1.msra.mxu0 0.0
    %2214 = vmatprep.subr.mxu0 0.0
    %2215 = vmatpush1.msra.mxu0 0.0
    %2216 = vmatprep.subr.mxu0 0.0
    %2217 = vmatpush1.msra.mxu0 0.0
    %2218 = vmatprep.subr.mxu0 0.0
    %2219 = vmatpush1.msra.mxu0 0.0
    %2220 = vmatprep.subr.mxu0 0.0
    %2221 = vmatpush1.msra.mxu0 0.0
    %2222 = vmatprep.mubr.f32.mxu0 0.0
    %2223 = vmatmul.mubr.f32.gmra.mrb[0].mxu0 %v2153
    %v2224 = vpop.f32.mrb[0].mxu0
    %v2225 = vadd.f32 %v2151, %v2224
    %v2226 = vpop.f32.mrb[0].mxu0
    %2227 = vmatprep.mubr.f32.mxu0 0.0
    %2228 = vmatmul.mubr.f32.gmra.mrb[0].mxu0 %v2156
    %v2229 = vpop.f32.mrb[0].mxu0
    %v2230 = vadd.f32 %v2151, %v2229
    %v2231 = vpop.f32.mrb[0].mxu0
    %2232 = vdwg.mxu0
    %v2233 = vadd.f32 %v2225, %v1125
    %v2234 = vadd.f32 %v2230, %v1126
    %v2235 = vsel %vm78, %v2233, 0.0
    %2236 = vadd.xlane.f32.xlu0 %v2235
    %v2237 = vpop.xlane.xlu0 %2236
    %v2238 = vsel %vm78, %v2234, 0.0
    %2239 = vadd.xlane.f32.xlu0 %v2238
    %v2240 = vpop.xlane.xlu0 %2239
    %v2241 = vmul.f32 %v2237, %v85
    %v2242 = vmul.f32 %v2240, %v85
    %v2243 = vsub.f32 %v2233, %v2241
    %v2244 = vsub.f32 %v2234, %v2242
    %v2245 = vmul.f32 %v2243, %v2243
    %v2246 = vmul.f32 %v2244, %v2244
    %v2247 = vsel %vm78, %v2245, 0.0
    %2248 = vadd.xlane.f32.xlu0 %v2247
    %v2249 = vpop.xlane.xlu0 %2248
    %v2250 = vsel %vm78, %v2246, 0.0
    %2251 = vadd.xlane.f32.xlu0 %v2250
    %v2252 = vpop.xlane.xlu0 %2251
    %v2253 = vmul.f32 %v2249, %v85
    %v2254 = vmul.f32 %v2252, %v85
    %v2255 = vadd.f32 %v2253, 1e-06
    %v2256 = vadd.f32 %v2254, 1e-06
    %v2257 = vrsqrt.pop %v2255
    %v2258 = vrsqrt.pop %v2256
    %v2259 = vmul.f32 %v2243, %v2257
    %v2260 = vmul.f32 %v2244, %v2258
    %v2261 = vlaneseq
    %v2262 = vshrl.u32 %v2261, 7
    %v2263 = vsub.s32 0, %v2262
    %v2264 = vrot.slane %v77, %v2263
    %v2265 = vmul.f32 %v2259, %v2264
    %v2266 = vmul.f32 %v2260, %v2264
    %v2267 = vlaneseq
    %v2268 = vshrl.u32 %v2267, 7
    %v2269 = vsub.s32 1, %v2268
    %v2270 = vrot.slane %v77, %v2269
    %v2271 = vadd.f32 %v2265, %v2270
    %v2272 = vadd.f32 %v2266, %v2270
    %v2273 = vlaneseq
    %v2274 = vshrl.u32 %v2273, 7
    %v2275 = vsub.s32 0, %v2274
    %v2276 = vrot.slane %v55, %v2275
    %v2278 = vsel %vm78, %v2271, 0
    %v2281 = vsel %vm78, %v2272, 0
    %2283 = vmatprep.subr.mxu0 0.0
    %2284 = vmatpush1.msra.mxu0 %v50
    %2285 = vmatprep.subr.mxu0 0.0
    %2286 = vmatpush1.msra.mxu0 %v51
    %2287 = vmatprep.subr.mxu0 0.0
    %2288 = vmatpush1.msra.mxu0 %v52
    %2289 = vmatprep.subr.mxu0 0.0
    %2290 = vmatpush1.msra.mxu0 %v53
    %2291 = vmatprep.subr.mxu0 0.0
    %2292 = vmatpush1.msra.mxu0 0.0
    %2293 = vmatprep.subr.mxu0 0.0
    %2294 = vmatpush1.msra.mxu0 0.0
    %2295 = vmatprep.subr.mxu0 0.0
    %2296 = vmatpush1.msra.mxu0 0.0
    %2297 = vmatprep.subr.mxu0 0.0
    %2298 = vmatpush1.msra.mxu0 0.0
    %2299 = vmatprep.subr.mxu0 0.0
    %2300 = vmatpush1.msra.mxu0 0.0
    %2301 = vmatprep.subr.mxu0 0.0
    %2302 = vmatpush1.msra.mxu0 0.0
    %2303 = vmatprep.subr.mxu0 0.0
    %2304 = vmatpush1.msra.mxu0 0.0
    %2305 = vmatprep.subr.mxu0 0.0
    %2306 = vmatpush1.msra.mxu0 0.0
    %2307 = vmatprep.subr.mxu0 0.0
    %2308 = vmatpush1.msra.mxu0 0.0
    %2309 = vmatprep.subr.mxu0 0.0
    %2310 = vmatpush1.msra.mxu0 0.0
    %2311 = vmatprep.subr.mxu0 0.0
    %2312 = vmatpush1.msra.mxu0 0.0
    %2313 = vmatprep.subr.mxu0 0.0
    %2314 = vmatpush1.msra.mxu0 0.0
    %2315 = vmatprep.subr.mxu0 0.0
    %2316 = vmatpush1.msra.mxu0 0.0
    %2317 = vmatprep.subr.mxu0 0.0
    %2318 = vmatpush1.msra.mxu0 0.0
    %2319 = vmatprep.subr.mxu0 0.0
    %2320 = vmatpush1.msra.mxu0 0.0
    %2321 = vmatprep.subr.mxu0 0.0
    %2322 = vmatpush1.msra.mxu0 0.0
    %2323 = vmatprep.subr.mxu0 0.0
    %2324 = vmatpush1.msra.mxu0 0.0
    %2325 = vmatprep.subr.mxu0 0.0
    %2326 = vmatpush1.msra.mxu0 0.0
    %2327 = vmatprep.subr.mxu0 0.0
    %2328 = vmatpush1.msra.mxu0 0.0
    %2329 = vmatprep.subr.mxu0 0.0
    %2330 = vmatpush1.msra.mxu0 0.0
    %2331 = vmatprep.subr.mxu0 0.0
    %2332 = vmatpush1.msra.mxu0 0.0
    %2333 = vmatprep.subr.mxu0 0.0
    %2334 = vmatpush1.msra.mxu0 0.0
    %2335 = vmatprep.subr.mxu0 0.0
    %2336 = vmatpush1.msra.mxu0 0.0
    %2337 = vmatprep.subr.mxu0 0.0
    %2338 = vmatpush1.msra.mxu0 0.0
    %2339 = vmatprep.subr.mxu0 0.0
    %2340 = vmatpush1.msra.mxu0 0.0
    %2341 = vmatprep.subr.mxu0 0.0
    %2342 = vmatpush1.msra.mxu0 0.0
    %2343 = vmatprep.subr.mxu0 0.0
    %2344 = vmatpush1.msra.mxu0 0.0
    %2345 = vmatprep.subr.mxu0 0.0
    %2346 = vmatpush1.msra.mxu0 0.0
    %2347 = vmatprep.mubr.f32.mxu0 0.0
    %2348 = vmatmul.mubr.f32.gmra.mrb[0].mxu0 %v2278
    %v2349 = vpop.f32.mrb[0].mxu0
    %v2350 = vadd.f32 %v2276, %v2349
    %v2351 = vpop.f32.mrb[0].mxu0
    %2352 = vmatprep.mubr.f32.mxu0 0.0
    %2353 = vmatmul.mubr.f32.gmra.mrb[0].mxu0 %v2281
    %v2354 = vpop.f32.mrb[0].mxu0
    %v2355 = vadd.f32 %v2276, %v2354
    %v2356 = vpop.f32.mrb[0].mxu0
    %2357 = vdwg.mxu0
    %v2358 = vmax.f32 %v2350, 0.0
    %v2359 = vmax.f32 %v2355, 0.0
    %v2360 = vlaneseq
    %v2361 = vshrl.u32 %v2360, 7
    %v2362 = vsub.s32 3, %v2361
    %v2363 = vrot.slane %v76, %v2362
    %vm2364 = vcmask 523264
    %v2366 = vsel %vm2364, %v2358, 0
    %v2369 = vsel %vm2364, %v2359, 0
    %2371 = vmatprep.subr.mxu0 0.0
    %2372 = vmatpush1.msra.mxu0 %v68
    %2373 = vmatprep.subr.mxu0 0.0
    %2374 = vmatpush1.msra.mxu0 %v69
    %2375 = vmatprep.subr.mxu0 0.0
    %2376 = vmatpush1.msra.mxu0 %v70
    %2377 = vmatprep.subr.mxu0 0.0
    %2378 = vmatpush1.msra.mxu0 %v71
    %2379 = vmatprep.subr.mxu0 0.0
    %2380 = vmatpush1.msra.mxu0 %v72
    %2381 = vmatprep.subr.mxu0 0.0
    %2382 = vmatpush1.msra.mxu0 %v73
    %2383 = vmatprep.subr.mxu0 0.0
    %2384 = vmatpush1.msra.mxu0 %v74
    %2385 = vmatprep.subr.mxu0 0.0
    %2386 = vmatpush1.msra.mxu0 %v75
    %2387 = vmatprep.subr.mxu0 0.0
    %2388 = vmatpush1.msra.mxu0 0.0
    %2389 = vmatprep.subr.mxu0 0.0
    %2390 = vmatpush1.msra.mxu0 0.0
    %2391 = vmatprep.subr.mxu0 0.0
    %2392 = vmatpush1.msra.mxu0 0.0
    %2393 = vmatprep.subr.mxu0 0.0
    %2394 = vmatpush1.msra.mxu0 0.0
    %2395 = vmatprep.subr.mxu0 0.0
    %2396 = vmatpush1.msra.mxu0 0.0
    %2397 = vmatprep.subr.mxu0 0.0
    %2398 = vmatpush1.msra.mxu0 0.0
    %2399 = vmatprep.subr.mxu0 0.0
    %2400 = vmatpush1.msra.mxu0 0.0
    %2401 = vmatprep.subr.mxu0 0.0
    %2402 = vmatpush1.msra.mxu0 0.0
    %2403 = vmatprep.subr.mxu0 0.0
    %2404 = vmatpush1.msra.mxu0 0.0
    %2405 = vmatprep.subr.mxu0 0.0
    %2406 = vmatpush1.msra.mxu0 0.0
    %2407 = vmatprep.subr.mxu0 0.0
    %2408 = vmatpush1.msra.mxu0 0.0
    %2409 = vmatprep.subr.mxu0 0.0
    %2410 = vmatpush1.msra.mxu0 0.0
    %2411 = vmatprep.subr.mxu0 0.0
    %2412 = vmatpush1.msra.mxu0 0.0
    %2413 = vmatprep.subr.mxu0 0.0
    %2414 = vmatpush1.msra.mxu0 0.0
    %2415 = vmatprep.subr.mxu0 0.0
    %2416 = vmatpush1.msra.mxu0 0.0
    %2417 = vmatprep.subr.mxu0 0.0
    %2418 = vmatpush1.msra.mxu0 0.0
    %2419 = vmatprep.subr.mxu0 0.0
    %2420 = vmatpush1.msra.mxu0 0.0
    %2421 = vmatprep.subr.mxu0 0.0
    %2422 = vmatpush1.msra.mxu0 0.0
    %2423 = vmatprep.subr.mxu0 0.0
    %2424 = vmatpush1.msra.mxu0 0.0
    %2425 = vmatprep.subr.mxu0 0.0
    %2426 = vmatpush1.msra.mxu0 0.0
    %2427 = vmatprep.subr.mxu0 0.0
    %2428 = vmatpush1.msra.mxu0 0.0
    %2429 = vmatprep.subr.mxu0 0.0
    %2430 = vmatpush1.msra.mxu0 0.0
    %2431 = vmatprep.subr.mxu0 0.0
    %2432 = vmatpush1.msra.mxu0 0.0
    %2433 = vmatprep.subr.mxu0 0.0
    %2434 = vmatpush1.msra.mxu0 0.0
    %2435 = vmatprep.mubr.f32.mxu0 0.0
    %2436 = vmatmul.mubr.f32.gmra.mrb[0].mxu0 %v2366
    %v2437 = vpop.f32.mrb[0].mxu0
    %v2438 = vadd.f32 %v2363, %v2437
    %v2439 = vpop.f32.mrb[0].mxu0
    %2440 = vmatprep.mubr.f32.mxu0 0.0
    %2441 = vmatmul.mubr.f32.gmra.mrb[0].mxu0 %v2369
    %v2442 = vpop.f32.mrb[0].mxu0
    %v2443 = vadd.f32 %v2363, %v2442
    %v2444 = vpop.f32.mrb[0].mxu0
    %2445 = vdwg.mxu0
    %v2446 = vadd.f32 %v2438, %v2233
    %v2447 = vadd.f32 %v2443, %v2234
    %2448 = vrot.lane.b32.xlu0 %v116, 32
    %v2449 = vpop.permute.xlu0 %2448
    %2450 = vrot.lane.b32.xlu0 %v117, 32
    %v2451 = vpop.permute.xlu0 %2450
    %2454 = vrot.lane.b32.xlu0 %v1801, 64
    %v2455 = vpop.permute.xlu0 %2454
    %2456 = vrot.lane.b32.xlu0 %v1817, 64
    %v2457 = vpop.permute.xlu0 %2456
    %v2460 = vsel %vm78, %v2446, %v2449
    %v2461 = vsel %vm78, %v2447, %v2451
    %v2462 = vsel %vm2364, %v2460, %v2455
    %v2463 = vsel %vm2364, %v2461, %v2457
    %vm2464 = vcmask 654336
    %v2465 = vsel %vm2464, %v2462, 0.0
    %v2466 = vsel %vm2464, %v2463, 0.0
    %2467 = vst [vmem:[#allocation2] sm:$0xff] %v2465
    %2468 = vst [vmem:[#allocation2 + $0x8] sm:$0xff] %v2466
    // Predicated region
    $region30: #{tpu_custom_call.1} parent=1 // pred_check
      _
    $region31: #{tpu_custom_call.1} parent=1 // pred_check_branch
      %2470 = sbr.rel (0) target = $region33
    $region32: #{tpu_custom_call.1} parent=1 // pred_region
      %s2472 = ssub.s32 256, 256
      %2473 = vsyncadd [#allocation3], %s2472
      %s2474 = sshll.u32 [#allocation2], 4
      %s2475 = int_to_ptr.vmem [resolvable:$true] %s2474
      %2480 = dma.vmem_to_hbm [thread:$0]  %s2475, 256, %s7, [#allocation3], 128, 128, 8
    $region33: #{tpu_custom_call.1} parent=1 // pred_fallthru
      _
    // Predicated region
    $region34: #{tpu_custom_call.1} parent=1 // pred_check
      _
    $region35: #{tpu_custom_call.1} parent=1 // pred_check_branch
      %2482 = sbr.rel (0) target = $region37
    $region36: #{tpu_custom_call.1} parent=1 // pred_region
      %2483 = dma.done [#allocation3], 256
    $region37: #{tpu_custom_call.1} parent=1 // pred_fallthru
      _
    %2484 = vsyncpa [#allocation3], 1

</llo_original>
